<compile_context>
chip_gen: v5e
topology: v5e:2x2
jax: 0.10.0
libtpu: 0.0.40
codegen_flags: <defaults>
</compile_context>

<pallas_src>
import numpy as np
import jax
import jax.numpy as jnp
from jax import lax
from jax.experimental import pallas as pl
from jax.experimental.pallas import tpu as pltpu

LRELU_SLOPE = 0.2
PN_EPS = 1e-8          # TODO(synk): Pixel_norm body not in spec; standard ProGAN mean-based norm assumed.
RGB_PAD = 128          # lane-dense padded width of the 3-channel RGB head


# ---------------------------------------------------------------------------
# Pallas kernels
# ---------------------------------------------------------------------------
def _conv1_fused_kernel(x_ref, w_ref, b_ref, o_ref):
    """(B*16, 16*C) @ (16*C, C) + bias -> LeakyReLU -> PixelNorm over lanes."""
    acc = jnp.dot(x_ref[...], w_ref[...], preferred_element_type=jnp.float32)
    r = acc + b_ref[...]
    r = jnp.where(r >= 0, r, LRELU_SLOPE * r)
    ms = jnp.mean(r * r, axis=-1, keepdims=True)
    o_ref[...] = (r * lax.rsqrt(ms + PN_EPS)).astype(o_ref.dtype)


def _conv2_torgb_kernel(p_ref, w2_ref, b2_ref, w3_ref, b3_ref, o_ref):
    """conv2 (im2col GEMM) + bias + LeakyReLU + PixelNorm, then ToRGB 1x1 + tanh."""
    h = jnp.dot(p_ref[...], w2_ref[...], preferred_element_type=jnp.float32)
    h = h + b2_ref[...]
    h = jnp.where(h >= 0, h, LRELU_SLOPE * h)
    ms = jnp.mean(h * h, axis=-1, keepdims=True)
    h = h * lax.rsqrt(ms + PN_EPS)
    rgb = jnp.dot(h.astype(w3_ref.dtype), w3_ref[...],
                  preferred_element_type=jnp.float32) + b3_ref[...]
    o_ref[...] = jnp.tanh(rgb)


def _conv1_fused(xbig, w1, b1):
    M, K = xbig.shape
    N = w1.shape[1]
    return pl.pallas_call(
        _conv1_fused_kernel,
        out_shape=jax.ShapeDtypeStruct((M, N), jnp.bfloat16),
        grid_spec=pltpu.PrefetchScalarGridSpec(
            num_scalar_prefetch=0,
            grid=(1,),
            in_specs=[pl.BlockSpec((M, K), lambda i: (0, 0)),
                      pl.BlockSpec((K, N), lambda i: (0, 0)),
                      pl.BlockSpec((1, N), lambda i: (0, 0))],
            out_specs=pl.BlockSpec((M, N), lambda i: (0, 0)),
        ),
        compiler_params=pltpu.CompilerParams(
            dimension_semantics=("arbitrary",)),
    )(xbig, w1, b1)


def _conv2_torgb(patches, w2, b2, w3, b3):
    M, K = patches.shape
    N = w2.shape[1]
    return pl.pallas_call(
        _conv2_torgb_kernel,
        out_shape=jax.ShapeDtypeStruct((M, RGB_PAD), jnp.float32),
        grid_spec=pltpu.PrefetchScalarGridSpec(
            num_scalar_prefetch=0,
            grid=(1,),
            in_specs=[pl.BlockSpec((M, K), lambda i: (0, 0)),
                      pl.BlockSpec((K, N), lambda i: (0, 0)),
                      pl.BlockSpec((1, N), lambda i: (0, 0)),
                      pl.BlockSpec((N, RGB_PAD), lambda i: (0, 0)),
                      pl.BlockSpec((1, RGB_PAD), lambda i: (0, 0))],
            out_specs=pl.BlockSpec((M, RGB_PAD), lambda i: (0, 0)),
        ),
        compiler_params=pltpu.CompilerParams(
            dimension_semantics=("arbitrary",)),
    )(patches, w2, b2, w3, b3)


# ---------------------------------------------------------------------------
# Parameters (raw PyTorch-style) and cached, pre-processed kernel weights
# ---------------------------------------------------------------------------
def init_raw_params(key, latent_size, label_size):
    C = int(latent_size / 3 * 4)
    ks = jax.random.split(key, 4)
    p = {}
    p["embed"] = jax.random.normal(ks[0], (label_size, int(latent_size / 3)), jnp.float32)
    p["c1_w"] = jax.random.normal(ks[1], (C, C, 4, 4), jnp.float32)   # conv1 (4x4, pad 3)
    p["c1_b"] = jnp.zeros((C,), jnp.float32)
    p["c2_w"] = jax.random.normal(ks[2], (C, C, 3, 3), jnp.float32)   # conv2 (3x3, pad 1)
    p["c2_b"] = jnp.zeros((C,), jnp.float32)
    p["rgb_w"] = jax.random.normal(ks[3], (3, C, 1, 1), jnp.float32)  # ToRGB 1x1
    p["rgb_b"] = jnp.zeros((3,), jnp.float32)
    return p


def prepare_params(p):
    """One-time: scale (equalized LR), reorganize to GEMM layout, pad, cast bf16."""
    C = p["c1_w"].shape[0]
    assert C % 128 == 0, "channel count must be lane-dense for fused PixelNorm"
    s1 = np.sqrt(2.0 / (C * 4 * 4))
    s2 = np.sqrt(2.0 / (C * 3 * 3))
    s3 = np.sqrt(2.0 / (C * 1 * 1))
    # conv1 on a 1x1 input with pad 3: out(b,i,j,co) = sum_k x(b,k) w[co,k,3-i,3-j]
    # -> single GEMM weight W1[(p=i*4+j)*C + k, co]
    w1 = jnp.transpose(p["c1_w"][:, :, ::-1, ::-1], (2, 3, 1, 0)).reshape(16 * C, C) * s1
    # conv2 im2col weight W2[(u*3+v)*C + ci, co]
    w2 = jnp.transpose(p["c2_w"], (2, 3, 1, 0)).reshape(9 * C, C) * s2
    # ToRGB 1x1, padded to a lane-dense 128-wide head
    w3 = p["rgb_w"].reshape(3, C).T * s3
    w3 = jnp.pad(w3, ((0, 0), (0, RGB_PAD - 3)))
    b3 = jnp.pad(p["rgb_b"], (0, RGB_PAD - 3))
    return {
        "embed": p["embed"],
        "w1": w1.astype(jnp.bfloat16),
        "b1": p["c1_b"].reshape(1, C),
        "w2": w2.astype(jnp.bfloat16),
        "b2": p["c2_b"].reshape(1, C),
        "w3": w3.astype(jnp.bfloat16),
        "b3": b3.reshape(1, RGB_PAD),
    }


# ---------------------------------------------------------------------------
# Forward (jitted): depth=1, alpha=1 state of the PyTorch Generator
# ---------------------------------------------------------------------------
@jax.jit
def generator_forward(pp, z, label):
    # TODO(synk): depth>1 block loop and alpha<1 fade-in branch are never taken
    # at construction time (depth=1, alpha=1) and are not implemented.
    B = z.shape[0]
    C = pp["b1"].shape[1]
    emb = jnp.take(pp["embed"], label.astype(jnp.int32), axis=0)       # (B, latent/3)
    x = jnp.concatenate([z, emb], axis=1).astype(jnp.bfloat16)          # (B, C)

    # conv1 as one GEMM: block-diagonal input (B*16, 16*C) so the output is
    # directly the (B*16, C) 4x4 feature map (lane = channels).
    eye = jnp.eye(16, dtype=jnp.bfloat16)
    xbig = (eye[None, :, :, None] * x[:, None, None, :]).reshape(B * 16, 16 * C)
    h1 = _conv1_fused(xbig, pp["w1"], pp["b1"])                         # (B*16, C) bf16

    # conv2 im2col (3x3, pad 1 over the 4x4 map) — tiny, fused by XLA under jit
    h1 = h1.reshape(B, 4, 4, C)
    hp = jnp.pad(h1, ((0, 0), (1, 1), (1, 1), (0, 0)))
    patches = jnp.stack([hp[:, u:u + 4, v:v + 4, :]
                         for u in range(3) for v in range(3)], axis=3)
    patches = patches.reshape(B * 16, 9 * C)

    rgb = _conv2_torgb(patches, pp["w2"], pp["b2"], pp["w3"], pp["b3"])  # (B*16, 128)
    rgb = rgb[:, :3].reshape(B, 4, 4, 3)
    return jnp.transpose(rgb, (0, 3, 1, 2))                              # (B, 3, 4, 4)


# ---------------------------------------------------------------------------
# Pure-JAX f32 reference (lax.conv, PyTorch semantics) for a sanity check
# ---------------------------------------------------------------------------
def reference_forward(p, z, label):
    C = p["c1_w"].shape[0]
    lrelu = lambda t: jnp.where(t >= 0, t, LRELU_SLOPE * t)
    pnorm = lambda t: t * lax.rsqrt(jnp.mean(t * t, axis=1, keepdims=True) + PN_EPS)
    dn = ("NCHW", "OIHW", "NCHW")
    s1 = np.sqrt(2.0 / (C * 16)); s2 = np.sqrt(2.0 / (C * 9)); s3 = np.sqrt(2.0 / C)

    emb = p["embed"][label.astype(jnp.int32)]
    x = jnp.concatenate([z, emb], axis=1)[:, :, None, None]             # (B, C, 1, 1)
    y = lax.conv_general_dilated(x, p["c1_w"] * s1, (1, 1), ((3, 3), (3, 3)),
                                 dimension_numbers=dn) + p["c1_b"][None, :, None, None]
    y = pnorm(lrelu(y))
    y = lax.conv_general_dilated(y, p["c2_w"] * s2, (1, 1), ((1, 1), (1, 1)),
                                 dimension_numbers=dn) + p["c2_b"][None, :, None, None]
    y = pnorm(lrelu(y))
    y = lax.conv_general_dilated(y, p["rgb_w"] * s3, (1, 1), ((0, 0), (0, 0)),
                                 dimension_numbers=dn) + p["rgb_b"][None, :, None, None]
    return jnp.tanh(y)


if __name__ == "__main__":
    LATENT, LABEL_SIZE, B = 96, 5, 2        # channels = int(96/3*4) = 128
    key = jax.random.PRNGKey(0)
    kz, kl, kp = jax.random.split(key, 3)
    z = jax.random.normal(kz, (B, LATENT), jnp.float32)
    label = jax.random.randint(kl, (B,), 0, LABEL_SIZE, jnp.int32)

    raw = init_raw_params(kp, LATENT, LABEL_SIZE)
    pp = prepare_params(raw)                # cached: pre-scaled/padded bf16 weights

    out = generator_forward(pp, z, label)
    jax.block_until_ready(out)
    assert out.shape == (B, 3, 4, 4)

    ref = reference_forward(raw, z, label)
    np.testing.assert_allclose(np.asarray(out), np.asarray(ref), rtol=3e-2, atol=3e-2)

    print("KERNEL_OK")
</pallas_src>

<mosaic_0001>
module attributes {stable_mosaic.version = 11 : i64} {
  func.func @_conv1_fused_kernel(%arg0: i32, %arg1: memref<32x2048xbf16, #tpu.memory_space<vmem>>, %arg2: memref<2048x128xbf16, #tpu.memory_space<vmem>>, %arg3: memref<1x128xf32, #tpu.memory_space<vmem>>, %arg4: memref<32x128xbf16, #tpu.memory_space<vmem>>) attributes {dimension_semantics = [#tpu.dimension_semantics<arbitrary>], iteration_bounds = array<i64: 1>, scalar_prefetch = 0 : i64, scratch_operands = 0 : i64, tpu.core_type = #tpu.core_type<tc>, window_params = [{pipeline_mode = #tpu.pipeline_mode<synchronous>, transform_indices = @transform_0, window_bounds = array<i64: 32, 2048>}, {pipeline_mode = #tpu.pipeline_mode<synchronous>, transform_indices = @transform_1, window_bounds = array<i64: 2048, 128>}, {pipeline_mode = #tpu.pipeline_mode<synchronous>, transform_indices = @transform_2, window_bounds = array<i64: 1, 128>}, {pipeline_mode = #tpu.pipeline_mode<synchronous>, transform_indices = @transform_3, window_bounds = array<i64: 32, 128>}]} {
    %c0 = arith.constant 0 : index
    %c0_0 = arith.constant 0 : index
    %0 = vector.load %arg1[%c0, %c0_0] : memref<32x2048xbf16, #tpu.memory_space<vmem>>, vector<32x2048xbf16>
    %c0_1 = arith.constant 0 : index
    %c0_2 = arith.constant 0 : index
    %1 = vector.load %arg2[%c0_1, %c0_2] : memref<2048x128xbf16, #tpu.memory_space<vmem>>, vector<2048x128xbf16>
    %cst = arith.constant dense<0.000000e+00> : vector<32x128xf32>
    %2 = tpu.matmul %0, %1, %cst {dimension_numbers = #tpu.dot_dimension_numbers<[1], [0], [0], [1], [0, 0, 1, 1], [], []>} : vector<32x2048xbf16>, vector<2048x128xbf16>, vector<32x128xf32> -> vector<32x128xf32>
    %c0_3 = arith.constant 0 : index
    %c0_4 = arith.constant 0 : index
    %3 = vector.load %arg3[%c0_3, %c0_4] : memref<1x128xf32, #tpu.memory_space<vmem>>, vector<1x128xf32>
    %4 = vector.broadcast %3 : vector<1x128xf32> to vector<32x128xf32>
    %5 = arith.addf %2, %4 : vector<32x128xf32>
    %cst_5 = arith.constant 0.000000e+00 : f32
    %6 = vector.broadcast %cst_5 : f32 to vector<32x128xf32>
    %7 = arith.cmpf oge, %5, %6 : vector<32x128xf32>
    %cst_6 = arith.constant 2.000000e-01 : f32
    %8 = vector.broadcast %cst_6 : f32 to vector<32x128xf32>
    %9 = arith.mulf %8, %5 : vector<32x128xf32>
    %10 = arith.select %7, %5, %9 : vector<32x128xi1>, vector<32x128xf32>
    %11 = arith.mulf %10, %10 : vector<32x128xf32>
    %cst_7 = arith.constant dense<0.000000e+00> : vector<32xf32>
    %12 = vector.multi_reduction <add>, %11, %cst_7 [1] : vector<32x128xf32> to vector<32xf32>
    %13 = vector.shape_cast %12 : vector<32xf32> to vector<32x1xf32>
    %cst_8 = arith.constant 1.280000e+02 : f32
    %14 = vector.broadcast %cst_8 : f32 to vector<32x1xf32>
    %15 = arith.divf %13, %14 : vector<32x1xf32>
    %cst_9 = arith.constant 9.99999993E-9 : f32
    %16 = vector.broadcast %cst_9 : f32 to vector<32x1xf32>
    %17 = arith.addf %15, %16 : vector<32x1xf32>
    %18 = math.rsqrt %17 : vector<32x1xf32>
    %19 = vector.broadcast %18 : vector<32x1xf32> to vector<32x128xf32>
    %20 = arith.mulf %10, %19 : vector<32x128xf32>
    %21 = arith.truncf %20 : vector<32x128xf32> to vector<32x128xbf16>
    %c0_10 = arith.constant 0 : index
    %c0_11 = arith.constant 0 : index
    %22 = vector.load %arg4[%c0_10, %c0_11] : memref<32x128xbf16, #tpu.memory_space<vmem>>, vector<32x128xbf16>
    tpu.vector_store %arg4[%c0_10, %c0_11], %21 {strides = array<i32>} : memref<32x128xbf16, #tpu.memory_space<vmem>>, vector<32x128xbf16>,
    return
  }
  func.func @transform_0(%arg0: i32) -> (i32, i32) {
    %c0_i32 = arith.constant 0 : i32
    %c0_i32_0 = arith.constant 0 : i32
    %c0_i32_1 = arith.constant 0 : i32
    return %c0_i32, %c0_i32_0 : i32, i32
  }
  func.func @transform_1(%arg0: i32) -> (i32, i32) {
    %c0_i32 = arith.constant 0 : i32
    %c0_i32_0 = arith.constant 0 : i32
    %c0_i32_1 = arith.constant 0 : i32
    return %c0_i32, %c0_i32_0 : i32, i32
  }
  func.func @transform_2(%arg0: i32) -> (i32, i32) {
    %c0_i32 = arith.constant 0 : i32
    %c0_i32_0 = arith.constant 0 : i32
    %c0_i32_1 = arith.constant 0 : i32
    return %c0_i32, %c0_i32_0 : i32, i32
  }
  func.func @transform_3(%arg0: i32) -> (i32, i32) {
    %c0_i32 = arith.constant 0 : i32
    %c0_i32_0 = arith.constant 0 : i32
    %c0_i32_1 = arith.constant 0 : i32
    return %c0_i32, %c0_i32_0 : i32, i32
  }
}

module attributes {stable_mosaic.version = 11 : i64} {
  func.func @_conv2_torgb_kernel(%arg0: i32, %arg1: memref<32x1152xbf16, #tpu.memory_space<vmem>>, %arg2: memref<1152x128xbf16, #tpu.memory_space<vmem>>, %arg3: memref<1x128xf32, #tpu.memory_space<vmem>>, %arg4: memref<128x128xbf16, #tpu.memory_space<vmem>>, %arg5: memref<1x128xf32, #tpu.memory_space<vmem>>, %arg6: memref<32x128xf32, #tpu.memory_space<vmem>>) attributes {dimension_semantics = [#tpu.dimension_semantics<arbitrary>], iteration_bounds = array<i64: 1>, scalar_prefetch = 0 : i64, scratch_operands = 0 : i64, tpu.core_type = #tpu.core_type<tc>, window_params = [{pipeline_mode = #tpu.pipeline_mode<synchronous>, transform_indices = @transform_0, window_bounds = array<i64: 32, 1152>}, {pipeline_mode = #tpu.pipeline_mode<synchronous>, transform_indices = @transform_1, window_bounds = array<i64: 1152, 128>}, {pipeline_mode = #tpu.pipeline_mode<synchronous>, transform_indices = @transform_2, window_bounds = array<i64: 1, 128>}, {pipeline_mode = #tpu.pipeline_mode<synchronous>, transform_indices = @transform_3, window_bounds = array<i64: 128, 128>}, {pipeline_mode = #tpu.pipeline_mode<synchronous>, transform_indices = @transform_4, window_bounds = array<i64: 1, 128>}, {pipeline_mode = #tpu.pipeline_mode<synchronous>, transform_indices = @transform_5, window_bounds = array<i64: 32, 128>}]} {
    %c0 = arith.constant 0 : index
    %c0_0 = arith.constant 0 : index
    %0 = vector.load %arg1[%c0, %c0_0] : memref<32x1152xbf16, #tpu.memory_space<vmem>>, vector<32x1152xbf16>
    %c0_1 = arith.constant 0 : index
    %c0_2 = arith.constant 0 : index
    %1 = vector.load %arg2[%c0_1, %c0_2] : memref<1152x128xbf16, #tpu.memory_space<vmem>>, vector<1152x128xbf16>
    %cst = arith.constant dense<0.000000e+00> : vector<32x128xf32>
    %2 = tpu.matmul %0, %1, %cst {dimension_numbers = #tpu.dot_dimension_numbers<[1], [0], [0], [1], [0, 0, 1, 1], [], []>} : vector<32x1152xbf16>, vector<1152x128xbf16>, vector<32x128xf32> -> vector<32x128xf32>
    %c0_3 = arith.constant 0 : index
    %c0_4 = arith.constant 0 : index
    %3 = vector.load %arg3[%c0_3, %c0_4] : memref<1x128xf32, #tpu.memory_space<vmem>>, vector<1x128xf32>
    %4 = vector.broadcast %3 : vector<1x128xf32> to vector<32x128xf32>
    %5 = arith.addf %2, %4 : vector<32x128xf32>
    %cst_5 = arith.constant 0.000000e+00 : f32
    %6 = vector.broadcast %cst_5 : f32 to vector<32x128xf32>
    %7 = arith.cmpf oge, %5, %6 : vector<32x128xf32>
    %cst_6 = arith.constant 2.000000e-01 : f32
    %8 = vector.broadcast %cst_6 : f32 to vector<32x128xf32>
    %9 = arith.mulf %8, %5 : vector<32x128xf32>
    %10 = arith.select %7, %5, %9 : vector<32x128xi1>, vector<32x128xf32>
    %11 = arith.mulf %10, %10 : vector<32x128xf32>
    %cst_7 = arith.constant dense<0.000000e+00> : vector<32xf32>
    %12 = vector.multi_reduction <add>, %11, %cst_7 [1] : vector<32x128xf32> to vector<32xf32>
    %13 = vector.shape_cast %12 : vector<32xf32> to vector<32x1xf32>
    %cst_8 = arith.constant 1.280000e+02 : f32
    %14 = vector.broadcast %cst_8 : f32 to vector<32x1xf32>
    %15 = arith.divf %13, %14 : vector<32x1xf32>
    %cst_9 = arith.constant 9.99999993E-9 : f32
    %16 = vector.broadcast %cst_9 : f32 to vector<32x1xf32>
    %17 = arith.addf %15, %16 : vector<32x1xf32>
    %18 = math.rsqrt %17 : vector<32x1xf32>
    %19 = vector.broadcast %18 : vector<32x1xf32> to vector<32x128xf32>
    %20 = arith.mulf %10, %19 : vector<32x128xf32>
    %21 = arith.truncf %20 : vector<32x128xf32> to vector<32x128xbf16>
    %c0_10 = arith.constant 0 : index
    %c0_11 = arith.constant 0 : index
    %22 = vector.load %arg4[%c0_10, %c0_11] : memref<128x128xbf16, #tpu.memory_space<vmem>>, vector<128x128xbf16>
    %cst_12 = arith.constant dense<0.000000e+00> : vector<32x128xf32>
    %23 = tpu.matmul %21, %22, %cst_12 {dimension_numbers = #tpu.dot_dimension_numbers<[1], [0], [0], [1], [0, 0, 1, 1], [], []>} : vector<32x128xbf16>, vector<128x128xbf16>, vector<32x128xf32> -> vector<32x128xf32>
    %c0_13 = arith.constant 0 : index
    %c0_14 = arith.constant 0 : index
    %24 = vector.load %arg5[%c0_13, %c0_14] : memref<1x128xf32, #tpu.memory_space<vmem>>, vector<1x128xf32>
    %25 = vector.broadcast %24 : vector<1x128xf32> to vector<32x128xf32>
    %26 = arith.addf %23, %25 : vector<32x128xf32>
    %27 = math.tanh %26 : vector<32x128xf32>
    %c0_15 = arith.constant 0 : index
    %c0_16 = arith.constant 0 : index
    %28 = vector.load %arg6[%c0_15, %c0_16] : memref<32x128xf32, #tpu.memory_space<vmem>>, vector<32x128xf32>
    tpu.vector_store %arg6[%c0_15, %c0_16], %27 {strides = array<i32>} : memref<32x128xf32, #tpu.memory_space<vmem>>, vector<32x128xf32>,
    return
  }
  func.func @transform_0(%arg0: i32) -> (i32, i32) {
    %c0_i32 = arith.constant 0 : i32
    %c0_i32_0 = arith.constant 0 : i32
    %c0_i32_1 = arith.constant 0 : i32
    return %c0_i32, %c0_i32_0 : i32, i32
  }
  func.func @transform_1(%arg0: i32) -> (i32, i32) {
    %c0_i32 = arith.constant 0 : i32
    %c0_i32_0 = arith.constant 0 : i32
    %c0_i32_1 = arith.constant 0 : i32
    return %c0_i32, %c0_i32_0 : i32, i32
  }
  func.func @transform_2(%arg0: i32) -> (i32, i32) {
    %c0_i32 = arith.constant 0 : i32
    %c0_i32_0 = arith.constant 0 : i32
    %c0_i32_1 = arith.constant 0 : i32
    return %c0_i32, %c0_i32_0 : i32, i32
  }
  func.func @transform_3(%arg0: i32) -> (i32, i32) {
    %c0_i32 = arith.constant 0 : i32
    %c0_i32_0 = arith.constant 0 : i32
    %c0_i32_1 = arith.constant 0 : i32
    return %c0_i32, %c0_i32_0 : i32, i32
  }
  func.func @transform_4(%arg0: i32) -> (i32, i32) {
    %c0_i32 = arith.constant 0 : i32
    %c0_i32_0 = arith.constant 0 : i32
    %c0_i32_1 = arith.constant 0 : i32
    return %c0_i32, %c0_i32_0 : i32, i32
  }
  func.func @transform_5(%arg0: i32) -> (i32, i32) {
    %c0_i32 = arith.constant 0 : i32
    %c0_i32_0 = arith.constant 0 : i32
    %c0_i32_1 = arith.constant 0 : i32
    return %c0_i32, %c0_i32_0 : i32, i32
  }
}

</mosaic_0001>

<llo_original>
// kernel: generator_forward.3
$region0: #{generator_forward.3}
  #allocation0 [shape = 'u32[]', space=smem, size = 0x4, offset = 0x4, fixed_abs, tag = 'smem constant byte address 0x4 - core index']
  #allocation1 [shape = 'u32[72,128]{1,0:T(1,128)}', space=vmem, size = 0x9000, scoped, tag = 'internal scratch']
  %s0 = inlined_call_operand.vmem [shape: bf16[32,1152], index: 0, kind: input, shape index: {}]
  %s1 = inlined_call_operand.vmem [shape: bf16[1152,128], index: 1, kind: input, shape index: {}]
  %s2 = inlined_call_operand.vmem [shape: f32[1,128], index: 2, kind: input, shape index: {}]
  %s3 = inlined_call_operand.vmem [shape: bf16[128,128], index: 3, kind: input, shape index: {}]
  %s4 = inlined_call_operand.vmem [shape: f32[1,128], index: 4, kind: input, shape index: {}]
  %s5 = inlined_call_operand.vmem [shape: f32[32,128], index: 5, kind: output, shape index: {}]
  %s6 = sld [smem:[#allocation0]]
  $region30: #{generator_forward.3} parent=0
    _
  %s8 = ssub.s32 1, %s6
  %s9 = scalar_select 0, %s8, %s6
  // Predicated region
  $region2: #{generator_forward.3} parent=0 // pred_check
    _
  $region3: #{generator_forward.3} parent=0 // pred_check_branch
    %11 = sbr.rel (0) target = $region5
  $region4: #{generator_forward.3} parent=0 // pred_region
    _
  $region5: #{generator_forward.3} parent=0 // pred_fallthru
    _
  // Predicated region
  $region6: #{generator_forward.3} parent=0 // pred_check
    _
  $region7: #{generator_forward.3} parent=0 // pred_check_branch
    %13 = sbr.rel (0) target = $region9
  $region8: #{generator_forward.3} parent=0 // pred_region
    _
  $region9: #{generator_forward.3} parent=0 // pred_fallthru
    _
  // Predicated region
  $region10: #{generator_forward.3} parent=0 // pred_check
    _
  $region11: #{generator_forward.3} parent=0 // pred_check_branch
    %15 = sbr.rel (0) target = $region13
  $region12: #{generator_forward.3} parent=0 // pred_region
    _
  $region13: #{generator_forward.3} parent=0 // pred_fallthru
    _
  // Predicated region
  $region14: #{generator_forward.3} parent=0 // pred_check
    _
  $region15: #{generator_forward.3} parent=0 // pred_check_branch
    %17 = sbr.rel (0) target = $region17
  $region16: #{generator_forward.3} parent=0 // pred_region
    _
  $region17: #{generator_forward.3} parent=0 // pred_fallthru
    _
  // Predicated region
  $region18: #{generator_forward.3} parent=0 // pred_check
    _
  $region19: #{generator_forward.3} parent=0 // pred_check_branch
    %19 = sbr.rel (0) target = $region21
  $region20: #{generator_forward.3} parent=0 // pred_region
    _
  $region21: #{generator_forward.3} parent=0 // pred_fallthru
    _
  %v20 = vld [vmem:[%s0] sm:$0xff]
  %v21 = vld [vmem:[%s0 + $0x8] sm:$0xff]
  %v22 = vld [vmem:[%s0 + $0x10] sm:$0xff]
  %v23 = vld [vmem:[%s0 + $0x18] sm:$0xff]
  %v24 = vld [vmem:[%s0 + $0x20] sm:$0xf]
  %v25 = vld [vmem:[%s0 + $0x24] sm:$0xff]
  %v26 = vld [vmem:[%s0 + $0x2c] sm:$0xff]
  %v27 = vld [vmem:[%s0 + $0x34] sm:$0xff]
  %v28 = vld [vmem:[%s0 + $0x3c] sm:$0xff]
  %v29 = vld [vmem:[%s0 + $0x44] sm:$0xf]
  %v30 = vld [vmem:[%s0 + $0x48] sm:$0xff]
  %v31 = vld [vmem:[%s0 + $0x50] sm:$0xff]
  %v32 = vld [vmem:[%s0 + $0x58] sm:$0xff]
  %v33 = vld [vmem:[%s0 + $0x60] sm:$0xff]
  %v34 = vld [vmem:[%s0 + $0x68] sm:$0xf]
  %v35 = vld [vmem:[%s0 + $0x6c] sm:$0xff]
  %v36 = vld [vmem:[%s0 + $0x74] sm:$0xff]
  %v37 = vld [vmem:[%s0 + $0x7c] sm:$0xff]
  %v38 = vld [vmem:[%s0 + $0x84] sm:$0xff]
  %v39 = vld [vmem:[%s0 + $0x8c] sm:$0xf]
  %v40 = vld [vmem:[%s1] sm:$0xf]
  %v41 = vld [vmem:[%s1 + $0x4] sm:$0xf]
  %v42 = vld [vmem:[%s1 + $0x8] sm:$0xf]
  %v43 = vld [vmem:[%s1 + $0xc] sm:$0xf]
  %v44 = vld [vmem:[%s1 + $0x10] sm:$0xf]
  %v45 = vld [vmem:[%s1 + $0x14] sm:$0xf]
  %v46 = vld [vmem:[%s1 + $0x18] sm:$0xf]
  %v47 = vld [vmem:[%s1 + $0x1c] sm:$0xf]
  %v48 = vld [vmem:[%s1 + $0x20] sm:$0xf]
  %v49 = vld [vmem:[%s1 + $0x24] sm:$0xf]
  %v50 = vld [vmem:[%s1 + $0x28] sm:$0xf]
  %v51 = vld [vmem:[%s1 + $0x2c] sm:$0xf]
  %v52 = vld [vmem:[%s1 + $0x30] sm:$0xf]
  %v53 = vld [vmem:[%s1 + $0x34] sm:$0xf]
  %v54 = vld [vmem:[%s1 + $0x38] sm:$0xf]
  %v55 = vld [vmem:[%s1 + $0x3c] sm:$0xf]
  %v56 = vld [vmem:[%s1 + $0x40] sm:$0xf]
  %v57 = vld [vmem:[%s1 + $0x44] sm:$0xf]
  %v58 = vld [vmem:[%s1 + $0x48] sm:$0xf]
  %v59 = vld [vmem:[%s1 + $0x4c] sm:$0xf]
  %v60 = vld [vmem:[%s1 + $0x50] sm:$0xf]
  %v61 = vld [vmem:[%s1 + $0x54] sm:$0xf]
  %v62 = vld [vmem:[%s1 + $0x58] sm:$0xf]
  %v63 = vld [vmem:[%s1 + $0x5c] sm:$0xf]
  %v64 = vld [vmem:[%s1 + $0x60] sm:$0xf]
  %v65 = vld [vmem:[%s1 + $0x64] sm:$0xf]
  %v66 = vld [vmem:[%s1 + $0x68] sm:$0xf]
  %v67 = vld [vmem:[%s1 + $0x6c] sm:$0xf]
  %v68 = vld [vmem:[%s1 + $0x70] sm:$0xf]
  %v69 = vld [vmem:[%s1 + $0x74] sm:$0xf]
  %v70 = vld [vmem:[%s1 + $0x78] sm:$0xf]
  %v71 = vld [vmem:[%s1 + $0x7c] sm:$0xf]
  %v72 = vld [vmem:[%s1 + $0x80] sm:$0xf]
  %v73 = vld [vmem:[%s1 + $0x84] sm:$0xf]
  %v74 = vld [vmem:[%s1 + $0x88] sm:$0xf]
  %v75 = vld [vmem:[%s1 + $0x8c] sm:$0xf]
  %v76 = vld [vmem:[%s1 + $0x90] sm:$0xf]
  %v77 = vld [vmem:[%s1 + $0x94] sm:$0xf]
  %v78 = vld [vmem:[%s1 + $0x98] sm:$0xf]
  %v79 = vld [vmem:[%s1 + $0x9c] sm:$0xf]
  %v80 = vld [vmem:[%s1 + $0xa0] sm:$0xf]
  %v81 = vld [vmem:[%s1 + $0xa4] sm:$0xf]
  %v82 = vld [vmem:[%s1 + $0xa8] sm:$0xf]
  %v83 = vld [vmem:[%s1 + $0xac] sm:$0xf]
  %v84 = vld [vmem:[%s1 + $0xb0] sm:$0xf]
  %v85 = vld [vmem:[%s1 + $0xb4] sm:$0xf]
  %v86 = vld [vmem:[%s1 + $0xb8] sm:$0xf]
  %v87 = vld [vmem:[%s1 + $0xbc] sm:$0xf]
  %v88 = vld [vmem:[%s1 + $0xc0] sm:$0xf]
  %v89 = vld [vmem:[%s1 + $0xc4] sm:$0xf]
  %v90 = vld [vmem:[%s1 + $0xc8] sm:$0xf]
  %v91 = vld [vmem:[%s1 + $0xcc] sm:$0xf]
  %v92 = vld [vmem:[%s1 + $0xd0] sm:$0xf]
  %v93 = vld [vmem:[%s1 + $0xd4] sm:$0xf]
  %v94 = vld [vmem:[%s1 + $0xd8] sm:$0xf]
  %v95 = vld [vmem:[%s1 + $0xdc] sm:$0xf]
  %v96 = vld [vmem:[%s1 + $0xe0] sm:$0xf]
  %v97 = vld [vmem:[%s1 + $0xe4] sm:$0xf]
  %v98 = vld [vmem:[%s1 + $0xe8] sm:$0xf]
  %v99 = vld [vmem:[%s1 + $0xec] sm:$0xf]
  %v100 = vld [vmem:[%s1 + $0xf0] sm:$0xf]
  %v101 = vld [vmem:[%s1 + $0xf4] sm:$0xf]
  %v102 = vld [vmem:[%s1 + $0xf8] sm:$0xf]
  %v103 = vld [vmem:[%s1 + $0xfc] sm:$0xf]
  %v104 = vld [vmem:[%s1 + $0x100] sm:$0xf]
  %v105 = vld [vmem:[%s1 + $0x104] sm:$0xf]
  %v106 = vld [vmem:[%s1 + $0x108] sm:$0xf]
  %v107 = vld [vmem:[%s1 + $0x10c] sm:$0xf]
  %v108 = vld [vmem:[%s1 + $0x110] sm:$0xf]
  %v109 = vld [vmem:[%s1 + $0x114] sm:$0xf]
  %v110 = vld [vmem:[%s1 + $0x118] sm:$0xf]
  %v111 = vld [vmem:[%s1 + $0x11c] sm:$0xf]
  %v112 = vld [vmem:[%s1 + $0x120] sm:$0xf]
  %v113 = vld [vmem:[%s1 + $0x124] sm:$0xf]
  %v114 = vld [vmem:[%s1 + $0x128] sm:$0xf]
  %v115 = vld [vmem:[%s1 + $0x12c] sm:$0xf]
  %v116 = vld [vmem:[%s1 + $0x130] sm:$0xf]
  %v117 = vld [vmem:[%s1 + $0x134] sm:$0xf]
  %v118 = vld [vmem:[%s1 + $0x138] sm:$0xf]
  %v119 = vld [vmem:[%s1 + $0x13c] sm:$0xf]
  %v120 = vld [vmem:[%s1 + $0x140] sm:$0xf]
  %v121 = vld [vmem:[%s1 + $0x144] sm:$0xf]
  %v122 = vld [vmem:[%s1 + $0x148] sm:$0xf]
  %v123 = vld [vmem:[%s1 + $0x14c] sm:$0xf]
  %v124 = vld [vmem:[%s1 + $0x150] sm:$0xf]
  %v125 = vld [vmem:[%s1 + $0x154] sm:$0xf]
  %v126 = vld [vmem:[%s1 + $0x158] sm:$0xf]
  %v127 = vld [vmem:[%s1 + $0x15c] sm:$0xf]
  %v128 = vld [vmem:[%s1 + $0x160] sm:$0xf]
  %v129 = vld [vmem:[%s1 + $0x164] sm:$0xf]
  %v130 = vld [vmem:[%s1 + $0x168] sm:$0xf]
  %v131 = vld [vmem:[%s1 + $0x16c] sm:$0xf]
  %v132 = vld [vmem:[%s1 + $0x170] sm:$0xf]
  %v133 = vld [vmem:[%s1 + $0x174] sm:$0xf]
  %v134 = vld [vmem:[%s1 + $0x178] sm:$0xf]
  %v135 = vld [vmem:[%s1 + $0x17c] sm:$0xf]
  %v136 = vld [vmem:[%s1 + $0x180] sm:$0xf]
  %v137 = vld [vmem:[%s1 + $0x184] sm:$0xf]
  %v138 = vld [vmem:[%s1 + $0x188] sm:$0xf]
  %v139 = vld [vmem:[%s1 + $0x18c] sm:$0xf]
  %v140 = vld [vmem:[%s1 + $0x190] sm:$0xf]
  %v141 = vld [vmem:[%s1 + $0x194] sm:$0xf]
  %v142 = vld [vmem:[%s1 + $0x198] sm:$0xf]
  %v143 = vld [vmem:[%s1 + $0x19c] sm:$0xf]
  %v144 = vld [vmem:[%s1 + $0x1a0] sm:$0xf]
  %v145 = vld [vmem:[%s1 + $0x1a4] sm:$0xf]
  %v146 = vld [vmem:[%s1 + $0x1a8] sm:$0xf]
  %v147 = vld [vmem:[%s1 + $0x1ac] sm:$0xf]
  %v148 = vld [vmem:[%s1 + $0x1b0] sm:$0xf]
  %v149 = vld [vmem:[%s1 + $0x1b4] sm:$0xf]
  %v150 = vld [vmem:[%s1 + $0x1b8] sm:$0xf]
  %v151 = vld [vmem:[%s1 + $0x1bc] sm:$0xf]
  %v152 = vld [vmem:[%s1 + $0x1c0] sm:$0xf]
  %v153 = vld [vmem:[%s1 + $0x1c4] sm:$0xf]
  %v154 = vld [vmem:[%s1 + $0x1c8] sm:$0xf]
  %v155 = vld [vmem:[%s1 + $0x1cc] sm:$0xf]
  %v156 = vld [vmem:[%s1 + $0x1d0] sm:$0xf]
  %v157 = vld [vmem:[%s1 + $0x1d4] sm:$0xf]
  %v158 = vld [vmem:[%s1 + $0x1d8] sm:$0xf]
  %v159 = vld [vmem:[%s1 + $0x1dc] sm:$0xf]
  %v160 = vld [vmem:[%s1 + $0x1e0] sm:$0xf]
  %v161 = vld [vmem:[%s1 + $0x1e4] sm:$0xf]
  %v162 = vld [vmem:[%s1 + $0x1e8] sm:$0xf]
  %v163 = vld [vmem:[%s1 + $0x1ec] sm:$0xf]
  %v164 = vld [vmem:[%s1 + $0x1f0] sm:$0xf]
  %v165 = vld [vmem:[%s1 + $0x1f4] sm:$0xf]
  %v166 = vld [vmem:[%s1 + $0x1f8] sm:$0xf]
  %v167 = vld [vmem:[%s1 + $0x1fc] sm:$0xf]
  %v168 = vld [vmem:[%s1 + $0x200] sm:$0xf]
  %v169 = vld [vmem:[%s1 + $0x204] sm:$0xf]
  %v170 = vld [vmem:[%s1 + $0x208] sm:$0xf]
  %v171 = vld [vmem:[%s1 + $0x20c] sm:$0xf]
  %v172 = vld [vmem:[%s1 + $0x210] sm:$0xf]
  %v173 = vld [vmem:[%s1 + $0x214] sm:$0xf]
  %v174 = vld [vmem:[%s1 + $0x218] sm:$0xf]
  %v175 = vld [vmem:[%s1 + $0x21c] sm:$0xf]
  %v176 = vld [vmem:[%s1 + $0x220] sm:$0xf]
  %v177 = vld [vmem:[%s1 + $0x224] sm:$0xf]
  %v178 = vld [vmem:[%s1 + $0x228] sm:$0xf]
  %v179 = vld [vmem:[%s1 + $0x22c] sm:$0xf]
  %v180 = vld [vmem:[%s1 + $0x230] sm:$0xf]
  %v181 = vld [vmem:[%s1 + $0x234] sm:$0xf]
  %v182 = vld [vmem:[%s1 + $0x238] sm:$0xf]
  %v183 = vld [vmem:[%s1 + $0x23c] sm:$0xf]
  %v184 = vld [vmem:[%s2] sm:$0x1]
  %v186 = vperm.slane %v184, 0
  %v208 = vunpack.c.l.b16 %v20
  %v209 = vunpack.c.h.b16 %v20
  %v210 = vunpack.c.l.b16 %v21
  %v211 = vunpack.c.h.b16 %v21
  %v212 = vunpack.c.l.b16 %v22
  %v213 = vunpack.c.h.b16 %v22
  %v214 = vunpack.c.l.b16 %v23
  %v215 = vunpack.c.h.b16 %v23
  %v216 = vunpack.c.l.b16 %v24
  %v217 = vunpack.c.l.b16 %v25
  %v218 = vunpack.c.h.b16 %v25
  %v219 = vunpack.c.l.b16 %v26
  %v220 = vunpack.c.h.b16 %v26
  %v221 = vunpack.c.l.b16 %v27
  %v222 = vunpack.c.h.b16 %v27
  %v223 = vunpack.c.l.b16 %v28
  %v224 = vunpack.c.h.b16 %v28
  %v225 = vunpack.c.l.b16 %v29
  %v226 = vunpack.c.l.b16 %v30
  %v227 = vunpack.c.h.b16 %v30
  %v228 = vunpack.c.l.b16 %v31
  %v229 = vunpack.c.h.b16 %v31
  %v230 = vunpack.c.l.b16 %v32
  %v231 = vunpack.c.h.b16 %v32
  %v232 = vunpack.c.l.b16 %v33
  %v233 = vunpack.c.h.b16 %v33
  %v234 = vunpack.c.l.b16 %v34
  %v235 = vunpack.c.l.b16 %v35
  %v236 = vunpack.c.h.b16 %v35
  %v237 = vunpack.c.l.b16 %v36
  %v238 = vunpack.c.h.b16 %v36
  %v239 = vunpack.c.l.b16 %v37
  %v240 = vunpack.c.h.b16 %v37
  %v241 = vunpack.c.l.b16 %v38
  %v242 = vunpack.c.h.b16 %v38
  %v243 = vunpack.c.l.b16 %v39
  %v244 = vpack.c.b16 %v217, %v208
  %v245 = vpack.c.b16 %v218, %v209
  %v246 = vpack.c.b16 %v219, %v210
  %v247 = vpack.c.b16 %v220, %v211
  %v248 = vpack.c.b16 %v221, %v212
  %v249 = vpack.c.b16 %v222, %v213
  %v250 = vpack.c.b16 %v223, %v214
  %v251 = vpack.c.b16 %v224, %v215
  %v252 = vpack.c.b16 %v225, %v216
  %v253 = vpack.c.b16 %v235, %v226
  %v254 = vpack.c.b16 %v236, %v227
  %v255 = vpack.c.b16 %v237, %v228
  %v256 = vpack.c.b16 %v238, %v229
  %v257 = vpack.c.b16 %v239, %v230
  %v258 = vpack.c.b16 %v240, %v231
  %v259 = vpack.c.b16 %v241, %v232
  %v260 = vpack.c.b16 %v242, %v233
  %v261 = vpack.c.b16 %v243, %v234
  %v424 = vunpack.c.l.b16 %v40
  %v425 = vunpack.c.l.b16 %v41
  %v426 = vunpack.c.l.b16 %v42
  %v427 = vunpack.c.l.b16 %v43
  %v428 = vunpack.c.l.b16 %v44
  %v429 = vunpack.c.l.b16 %v45
  %v430 = vunpack.c.l.b16 %v46
  %v431 = vunpack.c.l.b16 %v47
  %v432 = vunpack.c.l.b16 %v48
  %v433 = vunpack.c.l.b16 %v49
  %v434 = vunpack.c.l.b16 %v50
  %v435 = vunpack.c.l.b16 %v51
  %v436 = vunpack.c.l.b16 %v52
  %v437 = vunpack.c.l.b16 %v53
  %v438 = vunpack.c.l.b16 %v54
  %v439 = vunpack.c.l.b16 %v55
  %v440 = vunpack.c.l.b16 %v56
  %v441 = vunpack.c.l.b16 %v57
  %v442 = vunpack.c.l.b16 %v58
  %v443 = vunpack.c.l.b16 %v59
  %v444 = vunpack.c.l.b16 %v60
  %v445 = vunpack.c.l.b16 %v61
  %v446 = vunpack.c.l.b16 %v62
  %v447 = vunpack.c.l.b16 %v63
  %v448 = vunpack.c.l.b16 %v64
  %v449 = vunpack.c.l.b16 %v65
  %v450 = vunpack.c.l.b16 %v66
  %v451 = vunpack.c.l.b16 %v67
  %v452 = vunpack.c.l.b16 %v68
  %v453 = vunpack.c.l.b16 %v69
  %v454 = vunpack.c.l.b16 %v70
  %v455 = vunpack.c.l.b16 %v71
  %v456 = vunpack.c.l.b16 %v72
  %v457 = vunpack.c.l.b16 %v73
  %v458 = vunpack.c.l.b16 %v74
  %v459 = vunpack.c.l.b16 %v75
  %v460 = vunpack.c.l.b16 %v76
  %v461 = vunpack.c.l.b16 %v77
  %v462 = vunpack.c.l.b16 %v78
  %v463 = vunpack.c.l.b16 %v79
  %v464 = vunpack.c.l.b16 %v80
  %v465 = vunpack.c.l.b16 %v81
  %v466 = vunpack.c.l.b16 %v82
  %v467 = vunpack.c.l.b16 %v83
  %v468 = vunpack.c.l.b16 %v84
  %v469 = vunpack.c.l.b16 %v85
  %v470 = vunpack.c.l.b16 %v86
  %v471 = vunpack.c.l.b16 %v87
  %v472 = vunpack.c.l.b16 %v88
  %v473 = vunpack.c.l.b16 %v89
  %v474 = vunpack.c.l.b16 %v90
  %v475 = vunpack.c.l.b16 %v91
  %v476 = vunpack.c.l.b16 %v92
  %v477 = vunpack.c.l.b16 %v93
  %v478 = vunpack.c.l.b16 %v94
  %v479 = vunpack.c.l.b16 %v95
  %v480 = vunpack.c.l.b16 %v96
  %v481 = vunpack.c.l.b16 %v97
  %v482 = vunpack.c.l.b16 %v98
  %v483 = vunpack.c.l.b16 %v99
  %v484 = vunpack.c.l.b16 %v100
  %v485 = vunpack.c.l.b16 %v101
  %v486 = vunpack.c.l.b16 %v102
  %v487 = vunpack.c.l.b16 %v103
  %v488 = vunpack.c.l.b16 %v104
  %v489 = vunpack.c.l.b16 %v105
  %v490 = vunpack.c.l.b16 %v106
  %v491 = vunpack.c.l.b16 %v107
  %v492 = vunpack.c.l.b16 %v108
  %v493 = vunpack.c.l.b16 %v109
  %v494 = vunpack.c.l.b16 %v110
  %v495 = vunpack.c.l.b16 %v111
  %v496 = vunpack.c.l.b16 %v112
  %v497 = vunpack.c.l.b16 %v113
  %v498 = vunpack.c.l.b16 %v114
  %v499 = vunpack.c.l.b16 %v115
  %v500 = vunpack.c.l.b16 %v116
  %v501 = vunpack.c.l.b16 %v117
  %v502 = vunpack.c.l.b16 %v118
  %v503 = vunpack.c.l.b16 %v119
  %v504 = vunpack.c.l.b16 %v120
  %v505 = vunpack.c.l.b16 %v121
  %v506 = vunpack.c.l.b16 %v122
  %v507 = vunpack.c.l.b16 %v123
  %v508 = vunpack.c.l.b16 %v124
  %v509 = vunpack.c.l.b16 %v125
  %v510 = vunpack.c.l.b16 %v126
  %v511 = vunpack.c.l.b16 %v127
  %v512 = vunpack.c.l.b16 %v128
  %v513 = vunpack.c.l.b16 %v129
  %v514 = vunpack.c.l.b16 %v130
  %v515 = vunpack.c.l.b16 %v131
  %v516 = vunpack.c.l.b16 %v132
  %v517 = vunpack.c.l.b16 %v133
  %v518 = vunpack.c.l.b16 %v134
  %v519 = vunpack.c.l.b16 %v135
  %v520 = vunpack.c.l.b16 %v136
  %v521 = vunpack.c.l.b16 %v137
  %v522 = vunpack.c.l.b16 %v138
  %v523 = vunpack.c.l.b16 %v139
  %v524 = vunpack.c.l.b16 %v140
  %v525 = vunpack.c.l.b16 %v141
  %v526 = vunpack.c.l.b16 %v142
  %v527 = vunpack.c.l.b16 %v143
  %v528 = vunpack.c.l.b16 %v144
  %v529 = vunpack.c.l.b16 %v145
  %v530 = vunpack.c.l.b16 %v146
  %v531 = vunpack.c.l.b16 %v147
  %v532 = vunpack.c.l.b16 %v148
  %v533 = vunpack.c.l.b16 %v149
  %v534 = vunpack.c.l.b16 %v150
  %v535 = vunpack.c.l.b16 %v151
  %v536 = vunpack.c.l.b16 %v152
  %v537 = vunpack.c.l.b16 %v153
  %v538 = vunpack.c.l.b16 %v154
  %v539 = vunpack.c.l.b16 %v155
  %v540 = vunpack.c.l.b16 %v156
  %v541 = vunpack.c.l.b16 %v157
  %v542 = vunpack.c.l.b16 %v158
  %v543 = vunpack.c.l.b16 %v159
  %v544 = vunpack.c.l.b16 %v160
  %v545 = vunpack.c.l.b16 %v161
  %v546 = vunpack.c.l.b16 %v162
  %v547 = vunpack.c.l.b16 %v163
  %v548 = vunpack.c.l.b16 %v164
  %v549 = vunpack.c.l.b16 %v165
  %v550 = vunpack.c.l.b16 %v166
  %v551 = vunpack.c.l.b16 %v167
  %v552 = vunpack.c.l.b16 %v168
  %v553 = vunpack.c.l.b16 %v169
  %v554 = vunpack.c.l.b16 %v170
  %v555 = vunpack.c.l.b16 %v171
  %v556 = vunpack.c.l.b16 %v172
  %v557 = vunpack.c.l.b16 %v173
  %v558 = vunpack.c.l.b16 %v174
  %v559 = vunpack.c.l.b16 %v175
  %v560 = vunpack.c.l.b16 %v176
  %v561 = vunpack.c.l.b16 %v177
  %v562 = vunpack.c.l.b16 %v178
  %v563 = vunpack.c.l.b16 %v179
  %v564 = vunpack.c.l.b16 %v180
  %v565 = vunpack.c.l.b16 %v181
  %v566 = vunpack.c.l.b16 %v182
  %v567 = vunpack.c.l.b16 %v183
  %v568 = vpack.c.b16 %v425, %v424
  %v569 = vpack.c.b16 %v427, %v426
  %v570 = vpack.c.b16 %v429, %v428
  %v571 = vpack.c.b16 %v431, %v430
  %v572 = vpack.c.b16 %v433, %v432
  %v573 = vpack.c.b16 %v435, %v434
  %v574 = vpack.c.b16 %v437, %v436
  %v575 = vpack.c.b16 %v439, %v438
  %v576 = vpack.c.b16 %v441, %v440
  %v577 = vpack.c.b16 %v443, %v442
  %v578 = vpack.c.b16 %v445, %v444
  %v579 = vpack.c.b16 %v447, %v446
  %v580 = vpack.c.b16 %v449, %v448
  %v581 = vpack.c.b16 %v451, %v450
  %v582 = vpack.c.b16 %v453, %v452
  %v583 = vpack.c.b16 %v455, %v454
  %v584 = vpack.c.b16 %v457, %v456
  %v585 = vpack.c.b16 %v459, %v458
  %v586 = vpack.c.b16 %v461, %v460
  %v587 = vpack.c.b16 %v463, %v462
  %v588 = vpack.c.b16 %v465, %v464
  %v589 = vpack.c.b16 %v467, %v466
  %v590 = vpack.c.b16 %v469, %v468
  %v591 = vpack.c.b16 %v471, %v470
  %v592 = vpack.c.b16 %v473, %v472
  %v593 = vpack.c.b16 %v475, %v474
  %v594 = vpack.c.b16 %v477, %v476
  %v595 = vpack.c.b16 %v479, %v478
  %v596 = vpack.c.b16 %v481, %v480
  %v597 = vpack.c.b16 %v483, %v482
  %v598 = vpack.c.b16 %v485, %v484
  %v599 = vpack.c.b16 %v487, %v486
  %v600 = vpack.c.b16 %v489, %v488
  %v601 = vpack.c.b16 %v491, %v490
  %v602 = vpack.c.b16 %v493, %v492
  %v603 = vpack.c.b16 %v495, %v494
  %v604 = vpack.c.b16 %v497, %v496
  %v605 = vpack.c.b16 %v499, %v498
  %v606 = vpack.c.b16 %v501, %v500
  %v607 = vpack.c.b16 %v503, %v502
  %v608 = vpack.c.b16 %v505, %v504
  %v609 = vpack.c.b16 %v507, %v506
  %v610 = vpack.c.b16 %v509, %v508
  %v611 = vpack.c.b16 %v511, %v510
  %v612 = vpack.c.b16 %v513, %v512
  %v613 = vpack.c.b16 %v515, %v514
  %v614 = vpack.c.b16 %v517, %v516
  %v615 = vpack.c.b16 %v519, %v518
  %v616 = vpack.c.b16 %v521, %v520
  %v617 = vpack.c.b16 %v523, %v522
  %v618 = vpack.c.b16 %v525, %v524
  %v619 = vpack.c.b16 %v527, %v526
  %v620 = vpack.c.b16 %v529, %v528
  %v621 = vpack.c.b16 %v531, %v530
  %v622 = vpack.c.b16 %v533, %v532
  %v623 = vpack.c.b16 %v535, %v534
  %v624 = vpack.c.b16 %v537, %v536
  %v625 = vpack.c.b16 %v539, %v538
  %v626 = vpack.c.b16 %v541, %v540
  %v627 = vpack.c.b16 %v543, %v542
  %v628 = vpack.c.b16 %v545, %v544
  %v629 = vpack.c.b16 %v547, %v546
  %v630 = vpack.c.b16 %v549, %v548
  %v631 = vpack.c.b16 %v551, %v550
  %v632 = vpack.c.b16 %v553, %v552
  %v633 = vpack.c.b16 %v555, %v554
  %v634 = vpack.c.b16 %v557, %v556
  %v635 = vpack.c.b16 %v559, %v558
  %v636 = vpack.c.b16 %v561, %v560
  %v637 = vpack.c.b16 %v563, %v562
  %v638 = vpack.c.b16 %v565, %v564
  %v639 = vpack.c.b16 %v567, %v566
  %712 = vmatpush.bf16.msra.mxu0 %v575
  %713 = vmatpush.bf16.msra.mxu0 %v574
  %714 = vmatpush.bf16.msra.mxu0 %v573
  %715 = vmatpush.bf16.msra.mxu0 %v572
  %716 = vmatpush.bf16.msra.mxu0 %v571
  %717 = vmatpush.bf16.msra.mxu0 %v570
  %718 = vmatpush.bf16.msra.mxu0 %v569
  %719 = vmatpush.bf16.msra.mxu0 %v568
  %720 = vmatmul.bf16.gmra.mxu0 %v244
  %v721 = vpop.f32.mrf.mxu0
  %v722 = vadd.f32 %v186, %v721
  %v723 = vpop.f32.mrf.mxu0
  %v724 = vadd.f32 %v186, %v723
  %725 = vmatmul.bf16.gmra.mxu0 %v253
  %v726 = vpop.f32.mrf.mxu0
  %v727 = vadd.f32 %v186, %v726
  %v728 = vpop.f32.mrf.mxu0
  %v729 = vadd.f32 %v186, %v728
  %730 = vdwg.mxu0
  %731 = vmatpush.bf16.msra.mxu0 %v583
  %732 = vmatpush.bf16.msra.mxu0 %v582
  %733 = vmatpush.bf16.msra.mxu0 %v581
  %734 = vmatpush.bf16.msra.mxu0 %v580
  %735 = vmatpush.bf16.msra.mxu0 %v579
  %736 = vmatpush.bf16.msra.mxu0 %v578
  %737 = vmatpush.bf16.msra.mxu0 %v577
  %738 = vmatpush.bf16.msra.mxu0 %v576
  %739 = vmatmul.bf16.gmra.mxu0 %v245
  %v740 = vpop.f32.mrf.mxu0
  %v741 = vadd.f32 %v722, %v740
  %v742 = vpop.f32.mrf.mxu0
  %v743 = vadd.f32 %v724, %v742
  %744 = vmatmul.bf16.gmra.mxu0 %v254
  %v745 = vpop.f32.mrf.mxu0
  %v746 = vadd.f32 %v727, %v745
  %v747 = vpop.f32.mrf.mxu0
  %v748 = vadd.f32 %v729, %v747
  %749 = vdwg.mxu0
  %750 = vmatpush.bf16.msra.mxu0 %v591
  %751 = vmatpush.bf16.msra.mxu0 %v590
  %752 = vmatpush.bf16.msra.mxu0 %v589
  %753 = vmatpush.bf16.msra.mxu0 %v588
  %754 = vmatpush.bf16.msra.mxu0 %v587
  %755 = vmatpush.bf16.msra.mxu0 %v586
  %756 = vmatpush.bf16.msra.mxu0 %v585
  %757 = vmatpush.bf16.msra.mxu0 %v584
  %758 = vmatmul.bf16.gmra.mxu0 %v246
  %v759 = vpop.f32.mrf.mxu0
  %v760 = vadd.f32 %v741, %v759
  %v761 = vpop.f32.mrf.mxu0
  %v762 = vadd.f32 %v743, %v761
  %763 = vmatmul.bf16.gmra.mxu0 %v255
  %v764 = vpop.f32.mrf.mxu0
  %v765 = vadd.f32 %v746, %v764
  %v766 = vpop.f32.mrf.mxu0
  %v767 = vadd.f32 %v748, %v766
  %768 = vdwg.mxu0
  %769 = vmatpush.bf16.msra.mxu0 %v599
  %770 = vmatpush.bf16.msra.mxu0 %v598
  %771 = vmatpush.bf16.msra.mxu0 %v597
  %772 = vmatpush.bf16.msra.mxu0 %v596
  %773 = vmatpush.bf16.msra.mxu0 %v595
  %774 = vmatpush.bf16.msra.mxu0 %v594
  %775 = vmatpush.bf16.msra.mxu0 %v593
  %776 = vmatpush.bf16.msra.mxu0 %v592
  %777 = vmatmul.bf16.gmra.mxu0 %v247
  %v778 = vpop.f32.mrf.mxu0
  %v779 = vadd.f32 %v760, %v778
  %v780 = vpop.f32.mrf.mxu0
  %v781 = vadd.f32 %v762, %v780
  %782 = vmatmul.bf16.gmra.mxu0 %v256
  %v783 = vpop.f32.mrf.mxu0
  %v784 = vadd.f32 %v765, %v783
  %v785 = vpop.f32.mrf.mxu0
  %v786 = vadd.f32 %v767, %v785
  %787 = vdwg.mxu0
  %788 = vmatpush.bf16.msra.mxu0 %v607
  %789 = vmatpush.bf16.msra.mxu0 %v606
  %790 = vmatpush.bf16.msra.mxu0 %v605
  %791 = vmatpush.bf16.msra.mxu0 %v604
  %792 = vmatpush.bf16.msra.mxu0 %v603
  %793 = vmatpush.bf16.msra.mxu0 %v602
  %794 = vmatpush.bf16.msra.mxu0 %v601
  %795 = vmatpush.bf16.msra.mxu0 %v600
  %796 = vmatmul.bf16.gmra.mxu0 %v248
  %v797 = vpop.f32.mrf.mxu0
  %v798 = vadd.f32 %v779, %v797
  %v799 = vpop.f32.mrf.mxu0
  %v800 = vadd.f32 %v781, %v799
  %801 = vmatmul.bf16.gmra.mxu0 %v257
  %v802 = vpop.f32.mrf.mxu0
  %v803 = vadd.f32 %v784, %v802
  %v804 = vpop.f32.mrf.mxu0
  %v805 = vadd.f32 %v786, %v804
  %806 = vdwg.mxu0
  %807 = vmatpush.bf16.msra.mxu0 %v615
  %808 = vmatpush.bf16.msra.mxu0 %v614
  %809 = vmatpush.bf16.msra.mxu0 %v613
  %810 = vmatpush.bf16.msra.mxu0 %v612
  %811 = vmatpush.bf16.msra.mxu0 %v611
  %812 = vmatpush.bf16.msra.mxu0 %v610
  %813 = vmatpush.bf16.msra.mxu0 %v609
  %814 = vmatpush.bf16.msra.mxu0 %v608
  %815 = vmatmul.bf16.gmra.mxu0 %v249
  %v816 = vpop.f32.mrf.mxu0
  %v817 = vadd.f32 %v798, %v816
  %v818 = vpop.f32.mrf.mxu0
  %v819 = vadd.f32 %v800, %v818
  %820 = vmatmul.bf16.gmra.mxu0 %v258
  %v821 = vpop.f32.mrf.mxu0
  %v822 = vadd.f32 %v803, %v821
  %v823 = vpop.f32.mrf.mxu0
  %v824 = vadd.f32 %v805, %v823
  %825 = vdwg.mxu0
  %826 = vmatpush.bf16.msra.mxu0 %v623
  %827 = vmatpush.bf16.msra.mxu0 %v622
  %828 = vmatpush.bf16.msra.mxu0 %v621
  %829 = vmatpush.bf16.msra.mxu0 %v620
  %830 = vmatpush.bf16.msra.mxu0 %v619
  %831 = vmatpush.bf16.msra.mxu0 %v618
  %832 = vmatpush.bf16.msra.mxu0 %v617
  %833 = vmatpush.bf16.msra.mxu0 %v616
  %834 = vmatmul.bf16.gmra.mxu0 %v250
  %v835 = vpop.f32.mrf.mxu0
  %v836 = vadd.f32 %v817, %v835
  %v837 = vpop.f32.mrf.mxu0
  %v838 = vadd.f32 %v819, %v837
  %839 = vmatmul.bf16.gmra.mxu0 %v259
  %v840 = vpop.f32.mrf.mxu0
  %v841 = vadd.f32 %v822, %v840
  %v842 = vpop.f32.mrf.mxu0
  %v843 = vadd.f32 %v824, %v842
  %844 = vdwg.mxu0
  %845 = vmatpush.bf16.msra.mxu0 %v631
  %846 = vmatpush.bf16.msra.mxu0 %v630
  %847 = vmatpush.bf16.msra.mxu0 %v629
  %848 = vmatpush.bf16.msra.mxu0 %v628
  %849 = vmatpush.bf16.msra.mxu0 %v627
  %850 = vmatpush.bf16.msra.mxu0 %v626
  %851 = vmatpush.bf16.msra.mxu0 %v625
  %852 = vmatpush.bf16.msra.mxu0 %v624
  %853 = vmatmul.bf16.gmra.mxu0 %v251
  %v854 = vpop.f32.mrf.mxu0
  %v855 = vadd.f32 %v836, %v854
  %v856 = vpop.f32.mrf.mxu0
  %v857 = vadd.f32 %v838, %v856
  %858 = vmatmul.bf16.gmra.mxu0 %v260
  %v859 = vpop.f32.mrf.mxu0
  %v860 = vadd.f32 %v841, %v859
  %v861 = vpop.f32.mrf.mxu0
  %v862 = vadd.f32 %v843, %v861
  %863 = vdwg.mxu0
  %864 = vmatpush.bf16.msra.mxu0 %v639
  %865 = vmatpush.bf16.msra.mxu0 %v638
  %866 = vmatpush.bf16.msra.mxu0 %v637
  %867 = vmatpush.bf16.msra.mxu0 %v636
  %868 = vmatpush.bf16.msra.mxu0 %v635
  %869 = vmatpush.bf16.msra.mxu0 %v634
  %870 = vmatpush.bf16.msra.mxu0 %v633
  %871 = vmatpush.bf16.msra.mxu0 %v632
  %872 = vmatmul.bf16.gmra.mxu0 %v252
  %v873 = vpop.f32.mrf.mxu0
  %v874 = vadd.f32 %v855, %v873
  %v875 = vpop.f32.mrf.mxu0
  %v876 = vadd.f32 %v857, %v875
  %877 = vmatmul.bf16.gmra.mxu0 %v261
  %v878 = vpop.f32.mrf.mxu0
  %v879 = vadd.f32 %v860, %v878
  %v880 = vpop.f32.mrf.mxu0
  %v881 = vadd.f32 %v862, %v880
  %882 = vdwg.mxu0
  %vm883 = vcmp.ge.f32.partialorder %v874, 0.0
  %vm884 = vcmp.ge.f32.partialorder %v876, 0.0
  %vm885 = vcmp.ge.f32.partialorder %v879, 0.0
  %vm886 = vcmp.ge.f32.partialorder %v881, 0.0
  %v887 = vmul.f32 %v874, 0.2
  %v888 = vmul.f32 %v876, 0.2
  %v889 = vmul.f32 %v879, 0.2
  %v890 = vmul.f32 %v881, 0.2
  %v891 = vsel %vm883, %v874, %v887
  %v892 = vsel %vm884, %v876, %v888
  %v893 = vsel %vm885, %v879, %v889
  %v894 = vsel %vm886, %v881, %v890
  %v895 = vmul.f32 %v891, %v891
  %v896 = vmul.f32 %v892, %v892
  %v897 = vmul.f32 %v893, %v893
  %v898 = vmul.f32 %v894, %v894
  %899 = vadd.xlane.f32.xlu0 %v895
  %v900 = vpop.xlane.xlu0 %899
  %901 = vadd.xlane.f32.xlu0 %v896
  %v902 = vpop.xlane.xlu0 %901
  %903 = vadd.xlane.f32.xlu0 %v897
  %v904 = vpop.xlane.xlu0 %903
  %905 = vadd.xlane.f32.xlu0 %v898
  %v906 = vpop.xlane.xlu0 %905
  %v907 = vrcp.pop 128.0
  %v908 = vmul.f32 128.0, %v907
  %v909 = vsub.f32 1.0, %v908
  %v910 = vmul.f32 %v907, %v909
  %v911 = vadd.f32 %v907, %v910
  %vm912 = vweird.f32 %v907
  %v913 = vsel %vm912, %v907, %v911
  %v914 = vmul.f32 %v900, %v913
  %v915 = vmul.f32 %v902, %v913
  %v916 = vmul.f32 %v904, %v913
  %v917 = vmul.f32 %v906, %v913
  %v918 = vadd.f32 %v914, 1e-08
  %v919 = vadd.f32 %v915, 1e-08
  %v920 = vadd.f32 %v916, 1e-08
  %v921 = vadd.f32 %v917, 1e-08
  %v922 = vrsqrt.pop %v918
  %v923 = vmul.f32 %v922, %v918
  %v924 = vmul.f32 %v923, %v922
  %v925 = vmul.f32 0.5, %v924
  %v926 = vsub.f32 1.5, %v925
  %v927 = vmul.f32 %v922, %v926
  %vm928 = vweird.f32 %v918
  %vm929 = vweird.f32 %v922
  %vm930 = vmor %vm928, %vm929
  %v931 = vsel %vm930, %v922, %v927
  %v932 = vrsqrt.pop %v919
  %v933 = vmul.f32 %v932, %v919
  %v934 = vmul.f32 %v933, %v932
  %v935 = vmul.f32 0.5, %v934
  %v936 = vsub.f32 1.5, %v935
  %v937 = vmul.f32 %v932, %v936
  %vm938 = vweird.f32 %v919
  %vm939 = vweird.f32 %v932
  %vm940 = vmor %vm938, %vm939
  %v941 = vsel %vm940, %v932, %v937
  %v942 = vrsqrt.pop %v920
  %v943 = vmul.f32 %v942, %v920
  %v944 = vmul.f32 %v943, %v942
  %v945 = vmul.f32 0.5, %v944
  %v946 = vsub.f32 1.5, %v945
  %v947 = vmul.f32 %v942, %v946
  %vm948 = vweird.f32 %v920
  %vm949 = vweird.f32 %v942
  %vm950 = vmor %vm948, %vm949
  %v951 = vsel %vm950, %v942, %v947
  %v952 = vrsqrt.pop %v921
  %v953 = vmul.f32 %v952, %v921
  %v954 = vmul.f32 %v953, %v952
  %v955 = vmul.f32 0.5, %v954
  %v956 = vsub.f32 1.5, %v955
  %v957 = vmul.f32 %v952, %v956
  %vm958 = vweird.f32 %v921
  %vm959 = vweird.f32 %v952
  %vm960 = vmor %vm958, %vm959
  %v961 = vsel %vm960, %v952, %v957
  %v962 = vmul.f32 %v891, %v931
  %v963 = vmul.f32 %v892, %v941
  %v964 = vmul.f32 %v893, %v951
  %v965 = vmul.f32 %v894, %v961
  %v966 = vpack.c.bf16 %v963, %v962
  %v967 = vpack.c.bf16 %v965, %v964
  %v968 = vld [vmem:[%s3] sm:$0xf]
  %v969 = vld [vmem:[%s3 + $0x4] sm:$0xf]
  %v970 = vld [vmem:[%s3 + $0x8] sm:$0xf]
  %v971 = vld [vmem:[%s3 + $0xc] sm:$0xf]
  %v972 = vld [vmem:[%s3 + $0x10] sm:$0xf]
  %v973 = vld [vmem:[%s3 + $0x14] sm:$0xf]
  %v974 = vld [vmem:[%s3 + $0x18] sm:$0xf]
  %v975 = vld [vmem:[%s3 + $0x1c] sm:$0xf]
  %v976 = vld [vmem:[%s3 + $0x20] sm:$0xf]
  %v977 = vld [vmem:[%s3 + $0x24] sm:$0xf]
  %v978 = vld [vmem:[%s3 + $0x28] sm:$0xf]
  %v979 = vld [vmem:[%s3 + $0x2c] sm:$0xf]
  %v980 = vld [vmem:[%s3 + $0x30] sm:$0xf]
  %v981 = vld [vmem:[%s3 + $0x34] sm:$0xf]
  %v982 = vld [vmem:[%s3 + $0x38] sm:$0xf]
  %v983 = vld [vmem:[%s3 + $0x3c] sm:$0xf]
  %v984 = vld [vmem:[%s4] sm:$0x1]
  %v986 = vperm.slane %v984, 0
  %v1004 = vunpack.c.l.b16 %v968
  %v1005 = vunpack.c.l.b16 %v969
  %v1006 = vunpack.c.l.b16 %v970
  %v1007 = vunpack.c.l.b16 %v971
  %v1008 = vunpack.c.l.b16 %v972
  %v1009 = vunpack.c.l.b16 %v973
  %v1010 = vunpack.c.l.b16 %v974
  %v1011 = vunpack.c.l.b16 %v975
  %v1012 = vunpack.c.l.b16 %v976
  %v1013 = vunpack.c.l.b16 %v977
  %v1014 = vunpack.c.l.b16 %v978
  %v1015 = vunpack.c.l.b16 %v979
  %v1016 = vunpack.c.l.b16 %v980
  %v1017 = vunpack.c.l.b16 %v981
  %v1018 = vunpack.c.l.b16 %v982
  %v1019 = vunpack.c.l.b16 %v983
  %v1020 = vpack.c.b16 %v1005, %v1004
  %v1021 = vpack.c.b16 %v1007, %v1006
  %v1022 = vpack.c.b16 %v1009, %v1008
  %v1023 = vpack.c.b16 %v1011, %v1010
  %v1024 = vpack.c.b16 %v1013, %v1012
  %v1025 = vpack.c.b16 %v1015, %v1014
  %v1026 = vpack.c.b16 %v1017, %v1016
  %v1027 = vpack.c.b16 %v1019, %v1018
  %1036 = vmatpush.bf16.msra.mxu0 %v1027
  %1037 = vmatpush.bf16.msra.mxu0 %v1026
  %1038 = vmatpush.bf16.msra.mxu0 %v1025
  %1039 = vmatpush.bf16.msra.mxu0 %v1024
  %1040 = vmatpush.bf16.msra.mxu0 %v1023
  %1041 = vmatpush.bf16.msra.mxu0 %v1022
  %1042 = vmatpush.bf16.msra.mxu0 %v1021
  %1043 = vmatpush.bf16.msra.mxu0 %v1020
  %1044 = vmatmul.bf16.gmra.mxu0 %v966
  %v1045 = vpop.f32.mrf.mxu0
  %v1046 = vadd.f32 %v986, %v1045
  %v1047 = vpop.f32.mrf.mxu0
  %v1048 = vadd.f32 %v986, %v1047
  %1049 = vmatmul.bf16.gmra.mxu0 %v967
  %v1050 = vpop.f32.mrf.mxu0
  %v1051 = vadd.f32 %v986, %v1050
  %v1052 = vpop.f32.mrf.mxu0
  %v1053 = vadd.f32 %v986, %v1052
  %1054 = vdwg.mxu0
  %v1055 = vtanh.pop %v1046
  %v1056 = vtanh.pop %v1048
  %v1057 = vtanh.pop %v1051
  %v1058 = vtanh.pop %v1053
  %1059 = vst [vmem:[%s5] sm:$0xff] %v1055
  %1060 = vst [vmem:[%s5 + $0x8] sm:$0xff] %v1056
  %1061 = vst [vmem:[%s5 + $0x10] sm:$0xff] %v1057
  %1062 = vst [vmem:[%s5 + $0x18] sm:$0xff] %v1058
  // Predicated region
  $region22: #{generator_forward.3} parent=0 // pred_check
    _
  $region23: #{generator_forward.3} parent=0 // pred_check_branch
    %1064 = sbr.rel (0) target = $region25
  $region24: #{generator_forward.3} parent=0 // pred_region
    _
  $region25: #{generator_forward.3} parent=0 // pred_fallthru
    _
  // Predicated region
  $region26: #{generator_forward.3} parent=0 // pred_check
    _
  $region27: #{generator_forward.3} parent=0 // pred_check_branch
    %1066 = sbr.rel (0) target = $region29
  $region28: #{generator_forward.3} parent=0 // pred_region
    _
  $region29: #{generator_forward.3} parent=0 // pred_fallthru
    _

// kernel: generator_forward.2
$region0: #{generator_forward.2}
  #allocation0 [shape = 'u32[]', space=smem, size = 0x4, offset = 0x4, fixed_abs, tag = 'smem constant byte address 0x4 - core index']
  #allocation1 [shape = 'u32[72,128]{1,0:T(1,128)}', space=vmem, size = 0x9000, scoped, tag = 'internal scratch']
  %s0 = inlined_call_operand.vmem [shape: bf16[32,2048], index: 0, kind: input, shape index: {}]
  %s1 = inlined_call_operand.hbm [shape: bf16[2048,128], index: 1, kind: input, shape index: {}]
  %s2 = inlined_call_operand.vmem [shape: f32[1,128], index: 2, kind: input, shape index: {}]
  %s3 = inlined_call_operand.vmem [shape: bf16[32,128], index: 3, kind: output, shape index: {}]
  %s4 = sld [smem:[#allocation0]]
  $region26: #{generator_forward.2} parent=0
    _
  %s6 = ssub.s32 1, %s4
  %s7 = scalar_select 0, %s6, %s4
  $region1: #{generator_forward.2} parent=0
    #allocation2 [shape = 'u8[524288]{0}', space=vmem, size = 0x80000, scoped, tag = 'input window, operand 1, single buffered']
    #allocation3 [shape = 's32[1]{0}', space=sflag, size = 0x4, scoped, tag = 'scoped memory for generator_forward.2']
    %8 = vsyncpa [#allocation3], 0
    // Predicated region
    $region2: #{generator_forward.2} parent=1 // pred_check
      _
    $region3: #{generator_forward.2} parent=1 // pred_check_branch
      %10 = sbr.rel (0) target = $region5
    $region4: #{generator_forward.2} parent=1 // pred_region
      _
    $region5: #{generator_forward.2} parent=1 // pred_fallthru
      _
    // Predicated region
    $region6: #{generator_forward.2} parent=1 // pred_check
      _
    $region7: #{generator_forward.2} parent=1 // pred_check_branch
      %12 = sbr.rel (0) target = $region9
    $region8: #{generator_forward.2} parent=1 // pred_region
      %14 = vsyncadd [#allocation3], 0
      %s15 = sshll.u32 %s1, 4
      %s16 = int_to_ptr.hbm [resolvable:$true] %s15
      %s17 = sshll.u32 [#allocation2], 4
      %s18 = int_to_ptr.vmem [resolvable:$true] %s17
      %23 = dma.hbm_to_vmem [thread:$0]  %s16, 16384, %s18, [#allocation3], 64, 64, 4
    $region9: #{generator_forward.2} parent=1 // pred_fallthru
      _
    // Predicated region
    $region10: #{generator_forward.2} parent=1 // pred_check
      _
    $region11: #{generator_forward.2} parent=1 // pred_check_branch
      %25 = sbr.rel (0) target = $region13
    $region12: #{generator_forward.2} parent=1 // pred_region
      _
    $region13: #{generator_forward.2} parent=1 // pred_fallthru
      _
    // Predicated region
    $region14: #{generator_forward.2} parent=1 // pred_check
      _
    $region15: #{generator_forward.2} parent=1 // pred_check_branch
      %27 = sbr.rel (0) target = $region17
    $region16: #{generator_forward.2} parent=1 // pred_region
      %29 = dma.done [#allocation3], 16384
    $region17: #{generator_forward.2} parent=1 // pred_fallthru
      _
    %v30 = vld [vmem:[%s0] sm:$0xff]
    %v31 = vld [vmem:[%s0 + $0x8] sm:$0xff]
    %v32 = vld [vmem:[%s0 + $0x10] sm:$0xff]
    %v33 = vld [vmem:[%s0 + $0x18] sm:$0xff]
    %v34 = vld [vmem:[%s0 + $0x20] sm:$0xff]
    %v35 = vld [vmem:[%s0 + $0x28] sm:$0xff]
    %v36 = vld [vmem:[%s0 + $0x30] sm:$0xff]
    %v37 = vld [vmem:[%s0 + $0x38] sm:$0xff]
    %v38 = vld [vmem:[%s0 + $0x40] sm:$0xff]
    %v39 = vld [vmem:[%s0 + $0x48] sm:$0xff]
    %v40 = vld [vmem:[%s0 + $0x50] sm:$0xff]
    %v41 = vld [vmem:[%s0 + $0x58] sm:$0xff]
    %v42 = vld [vmem:[%s0 + $0x60] sm:$0xff]
    %v43 = vld [vmem:[%s0 + $0x68] sm:$0xff]
    %v44 = vld [vmem:[%s0 + $0x70] sm:$0xff]
    %v45 = vld [vmem:[%s0 + $0x78] sm:$0xff]
    %v46 = vld [vmem:[%s0 + $0x80] sm:$0xff]
    %v47 = vld [vmem:[%s0 + $0x88] sm:$0xff]
    %v48 = vld [vmem:[%s0 + $0x90] sm:$0xff]
    %v49 = vld [vmem:[%s0 + $0x98] sm:$0xff]
    %v50 = vld [vmem:[%s0 + $0xa0] sm:$0xff]
    %v51 = vld [vmem:[%s0 + $0xa8] sm:$0xff]
    %v52 = vld [vmem:[%s0 + $0xb0] sm:$0xff]
    %v53 = vld [vmem:[%s0 + $0xb8] sm:$0xff]
    %v54 = vld [vmem:[%s0 + $0xc0] sm:$0xff]
    %v55 = vld [vmem:[%s0 + $0xc8] sm:$0xff]
    %v56 = vld [vmem:[%s0 + $0xd0] sm:$0xff]
    %v57 = vld [vmem:[%s0 + $0xd8] sm:$0xff]
    %v58 = vld [vmem:[%s0 + $0xe0] sm:$0xff]
    %v59 = vld [vmem:[%s0 + $0xe8] sm:$0xff]
    %v60 = vld [vmem:[%s0 + $0xf0] sm:$0xff]
    %v61 = vld [vmem:[%s0 + $0xf8] sm:$0xff]
    %v62 = vld [vmem:[#allocation2] sm:$0xf]
    %v63 = vld [vmem:[#allocation2 + $0x4] sm:$0xf]
    %v64 = vld [vmem:[#allocation2 + $0x8] sm:$0xf]
    %v65 = vld [vmem:[#allocation2 + $0xc] sm:$0xf]
    %v66 = vld [vmem:[#allocation2 + $0x10] sm:$0xf]
    %v67 = vld [vmem:[#allocation2 + $0x14] sm:$0xf]
    %v68 = vld [vmem:[#allocation2 + $0x18] sm:$0xf]
    %v69 = vld [vmem:[#allocation2 + $0x1c] sm:$0xf]
    %v70 = vld [vmem:[#allocation2 + $0x20] sm:$0xf]
    %v71 = vld [vmem:[#allocation2 + $0x24] sm:$0xf]
    %v72 = vld [vmem:[#allocation2 + $0x28] sm:$0xf]
    %v73 = vld [vmem:[#allocation2 + $0x2c] sm:$0xf]
    %v74 = vld [vmem:[#allocation2 + $0x30] sm:$0xf]
    %v75 = vld [vmem:[#allocation2 + $0x34] sm:$0xf]
    %v76 = vld [vmem:[#allocation2 + $0x38] sm:$0xf]
    %v77 = vld [vmem:[#allocation2 + $0x3c] sm:$0xf]
    %v78 = vld [vmem:[#allocation2 + $0x40] sm:$0xf]
    %v79 = vld [vmem:[#allocation2 + $0x44] sm:$0xf]
    %v80 = vld [vmem:[#allocation2 + $0x48] sm:$0xf]
    %v81 = vld [vmem:[#allocation2 + $0x4c] sm:$0xf]
    %v82 = vld [vmem:[#allocation2 + $0x50] sm:$0xf]
    %v83 = vld [vmem:[#allocation2 + $0x54] sm:$0xf]
    %v84 = vld [vmem:[#allocation2 + $0x58] sm:$0xf]
    %v85 = vld [vmem:[#allocation2 + $0x5c] sm:$0xf]
    %v86 = vld [vmem:[#allocation2 + $0x60] sm:$0xf]
    %v87 = vld [vmem:[#allocation2 + $0x64] sm:$0xf]
    %v88 = vld [vmem:[#allocation2 + $0x68] sm:$0xf]
    %v89 = vld [vmem:[#allocation2 + $0x6c] sm:$0xf]
    %v90 = vld [vmem:[#allocation2 + $0x70] sm:$0xf]
    %v91 = vld [vmem:[#allocation2 + $0x74] sm:$0xf]
    %v92 = vld [vmem:[#allocation2 + $0x78] sm:$0xf]
    %v93 = vld [vmem:[#allocation2 + $0x7c] sm:$0xf]
    %v94 = vld [vmem:[#allocation2 + $0x80] sm:$0xf]
    %v95 = vld [vmem:[#allocation2 + $0x84] sm:$0xf]
    %v96 = vld [vmem:[#allocation2 + $0x88] sm:$0xf]
    %v97 = vld [vmem:[#allocation2 + $0x8c] sm:$0xf]
    %v98 = vld [vmem:[#allocation2 + $0x90] sm:$0xf]
    %v99 = vld [vmem:[#allocation2 + $0x94] sm:$0xf]
    %v100 = vld [vmem:[#allocation2 + $0x98] sm:$0xf]
    %v101 = vld [vmem:[#allocation2 + $0x9c] sm:$0xf]
    %v102 = vld [vmem:[#allocation2 + $0xa0] sm:$0xf]
    %v103 = vld [vmem:[#allocation2 + $0xa4] sm:$0xf]
    %v104 = vld [vmem:[#allocation2 + $0xa8] sm:$0xf]
    %v105 = vld [vmem:[#allocation2 + $0xac] sm:$0xf]
    %v106 = vld [vmem:[#allocation2 + $0xb0] sm:$0xf]
    %v107 = vld [vmem:[#allocation2 + $0xb4] sm:$0xf]
    %v108 = vld [vmem:[#allocation2 + $0xb8] sm:$0xf]
    %v109 = vld [vmem:[#allocation2 + $0xbc] sm:$0xf]
    %v110 = vld [vmem:[#allocation2 + $0xc0] sm:$0xf]
    %v111 = vld [vmem:[#allocation2 + $0xc4] sm:$0xf]
    %v112 = vld [vmem:[#allocation2 + $0xc8] sm:$0xf]
    %v113 = vld [vmem:[#allocation2 + $0xcc] sm:$0xf]
    %v114 = vld [vmem:[#allocation2 + $0xd0] sm:$0xf]
    %v115 = vld [vmem:[#allocation2 + $0xd4] sm:$0xf]
    %v116 = vld [vmem:[#allocation2 + $0xd8] sm:$0xf]
    %v117 = vld [vmem:[#allocation2 + $0xdc] sm:$0xf]
    %v118 = vld [vmem:[#allocation2 + $0xe0] sm:$0xf]
    %v119 = vld [vmem:[#allocation2 + $0xe4] sm:$0xf]
    %v120 = vld [vmem:[#allocation2 + $0xe8] sm:$0xf]
    %v121 = vld [vmem:[#allocation2 + $0xec] sm:$0xf]
    %v122 = vld [vmem:[#allocation2 + $0xf0] sm:$0xf]
    %v123 = vld [vmem:[#allocation2 + $0xf4] sm:$0xf]
    %v124 = vld [vmem:[#allocation2 + $0xf8] sm:$0xf]
    %v125 = vld [vmem:[#allocation2 + $0xfc] sm:$0xf]
    %v126 = vld [vmem:[#allocation2 + $0x100] sm:$0xf]
    %v127 = vld [vmem:[#allocation2 + $0x104] sm:$0xf]
    %v128 = vld [vmem:[#allocation2 + $0x108] sm:$0xf]
    %v129 = vld [vmem:[#allocation2 + $0x10c] sm:$0xf]
    %v130 = vld [vmem:[#allocation2 + $0x110] sm:$0xf]
    %v131 = vld [vmem:[#allocation2 + $0x114] sm:$0xf]
    %v132 = vld [vmem:[#allocation2 + $0x118] sm:$0xf]
    %v133 = vld [vmem:[#allocation2 + $0x11c] sm:$0xf]
    %v134 = vld [vmem:[#allocation2 + $0x120] sm:$0xf]
    %v135 = vld [vmem:[#allocation2 + $0x124] sm:$0xf]
    %v136 = vld [vmem:[#allocation2 + $0x128] sm:$0xf]
    %v137 = vld [vmem:[#allocation2 + $0x12c] sm:$0xf]
    %v138 = vld [vmem:[#allocation2 + $0x130] sm:$0xf]
    %v139 = vld [vmem:[#allocation2 + $0x134] sm:$0xf]
    %v140 = vld [vmem:[#allocation2 + $0x138] sm:$0xf]
    %v141 = vld [vmem:[#allocation2 + $0x13c] sm:$0xf]
    %v142 = vld [vmem:[#allocation2 + $0x140] sm:$0xf]
    %v143 = vld [vmem:[#allocation2 + $0x144] sm:$0xf]
    %v144 = vld [vmem:[#allocation2 + $0x148] sm:$0xf]
    %v145 = vld [vmem:[#allocation2 + $0x14c] sm:$0xf]
    %v146 = vld [vmem:[#allocation2 + $0x150] sm:$0xf]
    %v147 = vld [vmem:[#allocation2 + $0x154] sm:$0xf]
    %v148 = vld [vmem:[#allocation2 + $0x158] sm:$0xf]
    %v149 = vld [vmem:[#allocation2 + $0x15c] sm:$0xf]
    %v150 = vld [vmem:[#allocation2 + $0x160] sm:$0xf]
    %v151 = vld [vmem:[#allocation2 + $0x164] sm:$0xf]
    %v152 = vld [vmem:[#allocation2 + $0x168] sm:$0xf]
    %v153 = vld [vmem:[#allocation2 + $0x16c] sm:$0xf]
    %v154 = vld [vmem:[#allocation2 + $0x170] sm:$0xf]
    %v155 = vld [vmem:[#allocation2 + $0x174] sm:$0xf]
    %v156 = vld [vmem:[#allocation2 + $0x178] sm:$0xf]
    %v157 = vld [vmem:[#allocation2 + $0x17c] sm:$0xf]
    %v158 = vld [vmem:[#allocation2 + $0x180] sm:$0xf]
    %v159 = vld [vmem:[#allocation2 + $0x184] sm:$0xf]
    %v160 = vld [vmem:[#allocation2 + $0x188] sm:$0xf]
    %v161 = vld [vmem:[#allocation2 + $0x18c] sm:$0xf]
    %v162 = vld [vmem:[#allocation2 + $0x190] sm:$0xf]
    %v163 = vld [vmem:[#allocation2 + $0x194] sm:$0xf]
    %v164 = vld [vmem:[#allocation2 + $0x198] sm:$0xf]
    %v165 = vld [vmem:[#allocation2 + $0x19c] sm:$0xf]
    %v166 = vld [vmem:[#allocation2 + $0x1a0] sm:$0xf]
    %v167 = vld [vmem:[#allocation2 + $0x1a4] sm:$0xf]
    %v168 = vld [vmem:[#allocation2 + $0x1a8] sm:$0xf]
    %v169 = vld [vmem:[#allocation2 + $0x1ac] sm:$0xf]
    %v170 = vld [vmem:[#allocation2 + $0x1b0] sm:$0xf]
    %v171 = vld [vmem:[#allocation2 + $0x1b4] sm:$0xf]
    %v172 = vld [vmem:[#allocation2 + $0x1b8] sm:$0xf]
    %v173 = vld [vmem:[#allocation2 + $0x1bc] sm:$0xf]
    %v174 = vld [vmem:[#allocation2 + $0x1c0] sm:$0xf]
    %v175 = vld [vmem:[#allocation2 + $0x1c4] sm:$0xf]
    %v176 = vld [vmem:[#allocation2 + $0x1c8] sm:$0xf]
    %v177 = vld [vmem:[#allocation2 + $0x1cc] sm:$0xf]
    %v178 = vld [vmem:[#allocation2 + $0x1d0] sm:$0xf]
    %v179 = vld [vmem:[#allocation2 + $0x1d4] sm:$0xf]
    %v180 = vld [vmem:[#allocation2 + $0x1d8] sm:$0xf]
    %v181 = vld [vmem:[#allocation2 + $0x1dc] sm:$0xf]
    %v182 = vld [vmem:[#allocation2 + $0x1e0] sm:$0xf]
    %v183 = vld [vmem:[#allocation2 + $0x1e4] sm:$0xf]
    %v184 = vld [vmem:[#allocation2 + $0x1e8] sm:$0xf]
    %v185 = vld [vmem:[#allocation2 + $0x1ec] sm:$0xf]
    %v186 = vld [vmem:[#allocation2 + $0x1f0] sm:$0xf]
    %v187 = vld [vmem:[#allocation2 + $0x1f4] sm:$0xf]
    %v188 = vld [vmem:[#allocation2 + $0x1f8] sm:$0xf]
    %v189 = vld [vmem:[#allocation2 + $0x1fc] sm:$0xf]
    %v190 = vld [vmem:[#allocation2 + $0x200] sm:$0xf]
    %v191 = vld [vmem:[#allocation2 + $0x204] sm:$0xf]
    %v192 = vld [vmem:[#allocation2 + $0x208] sm:$0xf]
    %v193 = vld [vmem:[#allocation2 + $0x20c] sm:$0xf]
    %v194 = vld [vmem:[#allocation2 + $0x210] sm:$0xf]
    %v195 = vld [vmem:[#allocation2 + $0x214] sm:$0xf]
    %v196 = vld [vmem:[#allocation2 + $0x218] sm:$0xf]
    %v197 = vld [vmem:[#allocation2 + $0x21c] sm:$0xf]
    %v198 = vld [vmem:[#allocation2 + $0x220] sm:$0xf]
    %v199 = vld [vmem:[#allocation2 + $0x224] sm:$0xf]
    %v200 = vld [vmem:[#allocation2 + $0x228] sm:$0xf]
    %v201 = vld [vmem:[#allocation2 + $0x22c] sm:$0xf]
    %v202 = vld [vmem:[#allocation2 + $0x230] sm:$0xf]
    %v203 = vld [vmem:[#allocation2 + $0x234] sm:$0xf]
    %v204 = vld [vmem:[#allocation2 + $0x238] sm:$0xf]
    %v205 = vld [vmem:[#allocation2 + $0x23c] sm:$0xf]
    %v206 = vld [vmem:[#allocation2 + $0x240] sm:$0xf]
    %v207 = vld [vmem:[#allocation2 + $0x244] sm:$0xf]
    %v208 = vld [vmem:[#allocation2 + $0x248] sm:$0xf]
    %v209 = vld [vmem:[#allocation2 + $0x24c] sm:$0xf]
    %v210 = vld [vmem:[#allocation2 + $0x250] sm:$0xf]
    %v211 = vld [vmem:[#allocation2 + $0x254] sm:$0xf]
    %v212 = vld [vmem:[#allocation2 + $0x258] sm:$0xf]
    %v213 = vld [vmem:[#allocation2 + $0x25c] sm:$0xf]
    %v214 = vld [vmem:[#allocation2 + $0x260] sm:$0xf]
    %v215 = vld [vmem:[#allocation2 + $0x264] sm:$0xf]
    %v216 = vld [vmem:[#allocation2 + $0x268] sm:$0xf]
    %v217 = vld [vmem:[#allocation2 + $0x26c] sm:$0xf]
    %v218 = vld [vmem:[#allocation2 + $0x270] sm:$0xf]
    %v219 = vld [vmem:[#allocation2 + $0x274] sm:$0xf]
    %v220 = vld [vmem:[#allocation2 + $0x278] sm:$0xf]
    %v221 = vld [vmem:[#allocation2 + $0x27c] sm:$0xf]
    %v222 = vld [vmem:[#allocation2 + $0x280] sm:$0xf]
    %v223 = vld [vmem:[#allocation2 + $0x284] sm:$0xf]
    %v224 = vld [vmem:[#allocation2 + $0x288] sm:$0xf]
    %v225 = vld [vmem:[#allocation2 + $0x28c] sm:$0xf]
    %v226 = vld [vmem:[#allocation2 + $0x290] sm:$0xf]
    %v227 = vld [vmem:[#allocation2 + $0x294] sm:$0xf]
    %v228 = vld [vmem:[#allocation2 + $0x298] sm:$0xf]
    %v229 = vld [vmem:[#allocation2 + $0x29c] sm:$0xf]
    %v230 = vld [vmem:[#allocation2 + $0x2a0] sm:$0xf]
    %v231 = vld [vmem:[#allocation2 + $0x2a4] sm:$0xf]
    %v232 = vld [vmem:[#allocation2 + $0x2a8] sm:$0xf]
    %v233 = vld [vmem:[#allocation2 + $0x2ac] sm:$0xf]
    %v234 = vld [vmem:[#allocation2 + $0x2b0] sm:$0xf]
    %v235 = vld [vmem:[#allocation2 + $0x2b4] sm:$0xf]
    %v236 = vld [vmem:[#allocation2 + $0x2b8] sm:$0xf]
    %v237 = vld [vmem:[#allocation2 + $0x2bc] sm:$0xf]
    %v238 = vld [vmem:[#allocation2 + $0x2c0] sm:$0xf]
    %v239 = vld [vmem:[#allocation2 + $0x2c4] sm:$0xf]
    %v240 = vld [vmem:[#allocation2 + $0x2c8] sm:$0xf]
    %v241 = vld [vmem:[#allocation2 + $0x2cc] sm:$0xf]
    %v242 = vld [vmem:[#allocation2 + $0x2d0] sm:$0xf]
    %v243 = vld [vmem:[#allocation2 + $0x2d4] sm:$0xf]
    %v244 = vld [vmem:[#allocation2 + $0x2d8] sm:$0xf]
    %v245 = vld [vmem:[#allocation2 + $0x2dc] sm:$0xf]
    %v246 = vld [vmem:[#allocation2 + $0x2e0] sm:$0xf]
    %v247 = vld [vmem:[#allocation2 + $0x2e4] sm:$0xf]
    %v248 = vld [vmem:[#allocation2 + $0x2e8] sm:$0xf]
    %v249 = vld [vmem:[#allocation2 + $0x2ec] sm:$0xf]
    %v250 = vld [vmem:[#allocation2 + $0x2f0] sm:$0xf]
    %v251 = vld [vmem:[#allocation2 + $0x2f4] sm:$0xf]
    %v252 = vld [vmem:[#allocation2 + $0x2f8] sm:$0xf]
    %v253 = vld [vmem:[#allocation2 + $0x2fc] sm:$0xf]
    %v254 = vld [vmem:[#allocation2 + $0x300] sm:$0xf]
    %v255 = vld [vmem:[#allocation2 + $0x304] sm:$0xf]
    %v256 = vld [vmem:[#allocation2 + $0x308] sm:$0xf]
    %v257 = vld [vmem:[#allocation2 + $0x30c] sm:$0xf]
    %v258 = vld [vmem:[#allocation2 + $0x310] sm:$0xf]
    %v259 = vld [vmem:[#allocation2 + $0x314] sm:$0xf]
    %v260 = vld [vmem:[#allocation2 + $0x318] sm:$0xf]
    %v261 = vld [vmem:[#allocation2 + $0x31c] sm:$0xf]
    %v262 = vld [vmem:[#allocation2 + $0x320] sm:$0xf]
    %v263 = vld [vmem:[#allocation2 + $0x324] sm:$0xf]
    %v264 = vld [vmem:[#allocation2 + $0x328] sm:$0xf]
    %v265 = vld [vmem:[#allocation2 + $0x32c] sm:$0xf]
    %v266 = vld [vmem:[#allocation2 + $0x330] sm:$0xf]
    %v267 = vld [vmem:[#allocation2 + $0x334] sm:$0xf]
    %v268 = vld [vmem:[#allocation2 + $0x338] sm:$0xf]
    %v269 = vld [vmem:[#allocation2 + $0x33c] sm:$0xf]
    %v270 = vld [vmem:[#allocation2 + $0x340] sm:$0xf]
    %v271 = vld [vmem:[#allocation2 + $0x344] sm:$0xf]
    %v272 = vld [vmem:[#allocation2 + $0x348] sm:$0xf]
    %v273 = vld [vmem:[#allocation2 + $0x34c] sm:$0xf]
    %v274 = vld [vmem:[#allocation2 + $0x350] sm:$0xf]
    %v275 = vld [vmem:[#allocation2 + $0x354] sm:$0xf]
    %v276 = vld [vmem:[#allocation2 + $0x358] sm:$0xf]
    %v277 = vld [vmem:[#allocation2 + $0x35c] sm:$0xf]
    %v278 = vld [vmem:[#allocation2 + $0x360] sm:$0xf]
    %v279 = vld [vmem:[#allocation2 + $0x364] sm:$0xf]
    %v280 = vld [vmem:[#allocation2 + $0x368] sm:$0xf]
    %v281 = vld [vmem:[#allocation2 + $0x36c] sm:$0xf]
    %v282 = vld [vmem:[#allocation2 + $0x370] sm:$0xf]
    %v283 = vld [vmem:[#allocation2 + $0x374] sm:$0xf]
    %v284 = vld [vmem:[#allocation2 + $0x378] sm:$0xf]
    %v285 = vld [vmem:[#allocation2 + $0x37c] sm:$0xf]
    %v286 = vld [vmem:[#allocation2 + $0x380] sm:$0xf]
    %v287 = vld [vmem:[#allocation2 + $0x384] sm:$0xf]
    %v288 = vld [vmem:[#allocation2 + $0x388] sm:$0xf]
    %v289 = vld [vmem:[#allocation2 + $0x38c] sm:$0xf]
    %v290 = vld [vmem:[#allocation2 + $0x390] sm:$0xf]
    %v291 = vld [vmem:[#allocation2 + $0x394] sm:$0xf]
    %v292 = vld [vmem:[#allocation2 + $0x398] sm:$0xf]
    %v293 = vld [vmem:[#allocation2 + $0x39c] sm:$0xf]
    %v294 = vld [vmem:[#allocation2 + $0x3a0] sm:$0xf]
    %v295 = vld [vmem:[#allocation2 + $0x3a4] sm:$0xf]
    %v296 = vld [vmem:[#allocation2 + $0x3a8] sm:$0xf]
    %v297 = vld [vmem:[#allocation2 + $0x3ac] sm:$0xf]
    %v298 = vld [vmem:[#allocation2 + $0x3b0] sm:$0xf]
    %v299 = vld [vmem:[#allocation2 + $0x3b4] sm:$0xf]
    %v300 = vld [vmem:[#allocation2 + $0x3b8] sm:$0xf]
    %v301 = vld [vmem:[#allocation2 + $0x3bc] sm:$0xf]
    %v302 = vld [vmem:[#allocation2 + $0x3c0] sm:$0xf]
    %v303 = vld [vmem:[#allocation2 + $0x3c4] sm:$0xf]
    %v304 = vld [vmem:[#allocation2 + $0x3c8] sm:$0xf]
    %v305 = vld [vmem:[#allocation2 + $0x3cc] sm:$0xf]
    %v306 = vld [vmem:[#allocation2 + $0x3d0] sm:$0xf]
    %v307 = vld [vmem:[#allocation2 + $0x3d4] sm:$0xf]
    %v308 = vld [vmem:[#allocation2 + $0x3d8] sm:$0xf]
    %v309 = vld [vmem:[#allocation2 + $0x3dc] sm:$0xf]
    %v310 = vld [vmem:[#allocation2 + $0x3e0] sm:$0xf]
    %v311 = vld [vmem:[#allocation2 + $0x3e4] sm:$0xf]
    %v312 = vld [vmem:[#allocation2 + $0x3e8] sm:$0xf]
    %v313 = vld [vmem:[#allocation2 + $0x3ec] sm:$0xf]
    %v314 = vld [vmem:[#allocation2 + $0x3f0] sm:$0xf]
    %v315 = vld [vmem:[#allocation2 + $0x3f4] sm:$0xf]
    %v316 = vld [vmem:[#allocation2 + $0x3f8] sm:$0xf]
    %v317 = vld [vmem:[#allocation2 + $0x3fc] sm:$0xf]
    %v318 = vld [vmem:[%s2] sm:$0x1]
    %v320 = vperm.slane %v318, 0
    %v354 = vunpack.c.l.b16 %v30
    %v355 = vunpack.c.h.b16 %v30
    %v356 = vunpack.c.l.b16 %v31
    %v357 = vunpack.c.h.b16 %v31
    %v358 = vunpack.c.l.b16 %v32
    %v359 = vunpack.c.h.b16 %v32
    %v360 = vunpack.c.l.b16 %v33
    %v361 = vunpack.c.h.b16 %v33
    %v362 = vunpack.c.l.b16 %v34
    %v363 = vunpack.c.h.b16 %v34
    %v364 = vunpack.c.l.b16 %v35
    %v365 = vunpack.c.h.b16 %v35
    %v366 = vunpack.c.l.b16 %v36
    %v367 = vunpack.c.h.b16 %v36
    %v368 = vunpack.c.l.b16 %v37
    %v369 = vunpack.c.h.b16 %v37
    %v370 = vunpack.c.l.b16 %v38
    %v371 = vunpack.c.h.b16 %v38
    %v372 = vunpack.c.l.b16 %v39
    %v373 = vunpack.c.h.b16 %v39
    %v374 = vunpack.c.l.b16 %v40
    %v375 = vunpack.c.h.b16 %v40
    %v376 = vunpack.c.l.b16 %v41
    %v377 = vunpack.c.h.b16 %v41
    %v378 = vunpack.c.l.b16 %v42
    %v379 = vunpack.c.h.b16 %v42
    %v380 = vunpack.c.l.b16 %v43
    %v381 = vunpack.c.h.b16 %v43
    %v382 = vunpack.c.l.b16 %v44
    %v383 = vunpack.c.h.b16 %v44
    %v384 = vunpack.c.l.b16 %v45
    %v385 = vunpack.c.h.b16 %v45
    %v386 = vunpack.c.l.b16 %v46
    %v387 = vunpack.c.h.b16 %v46
    %v388 = vunpack.c.l.b16 %v47
    %v389 = vunpack.c.h.b16 %v47
    %v390 = vunpack.c.l.b16 %v48
    %v391 = vunpack.c.h.b16 %v48
    %v392 = vunpack.c.l.b16 %v49
    %v393 = vunpack.c.h.b16 %v49
    %v394 = vunpack.c.l.b16 %v50
    %v395 = vunpack.c.h.b16 %v50
    %v396 = vunpack.c.l.b16 %v51
    %v397 = vunpack.c.h.b16 %v51
    %v398 = vunpack.c.l.b16 %v52
    %v399 = vunpack.c.h.b16 %v52
    %v400 = vunpack.c.l.b16 %v53
    %v401 = vunpack.c.h.b16 %v53
    %v402 = vunpack.c.l.b16 %v54
    %v403 = vunpack.c.h.b16 %v54
    %v404 = vunpack.c.l.b16 %v55
    %v405 = vunpack.c.h.b16 %v55
    %v406 = vunpack.c.l.b16 %v56
    %v407 = vunpack.c.h.b16 %v56
    %v408 = vunpack.c.l.b16 %v57
    %v409 = vunpack.c.h.b16 %v57
    %v410 = vunpack.c.l.b16 %v58
    %v411 = vunpack.c.h.b16 %v58
    %v412 = vunpack.c.l.b16 %v59
    %v413 = vunpack.c.h.b16 %v59
    %v414 = vunpack.c.l.b16 %v60
    %v415 = vunpack.c.h.b16 %v60
    %v416 = vunpack.c.l.b16 %v61
    %v417 = vunpack.c.h.b16 %v61
    %v418 = vpack.c.b16 %v370, %v354
    %v419 = vpack.c.b16 %v371, %v355
    %v420 = vpack.c.b16 %v372, %v356
    %v421 = vpack.c.b16 %v373, %v357
    %v422 = vpack.c.b16 %v374, %v358
    %v423 = vpack.c.b16 %v375, %v359
    %v424 = vpack.c.b16 %v376, %v360
    %v425 = vpack.c.b16 %v377, %v361
    %v426 = vpack.c.b16 %v378, %v362
    %v427 = vpack.c.b16 %v379, %v363
    %v428 = vpack.c.b16 %v380, %v364
    %v429 = vpack.c.b16 %v381, %v365
    %v430 = vpack.c.b16 %v382, %v366
    %v431 = vpack.c.b16 %v383, %v367
    %v432 = vpack.c.b16 %v384, %v368
    %v433 = vpack.c.b16 %v385, %v369
    %v434 = vpack.c.b16 %v402, %v386
    %v435 = vpack.c.b16 %v403, %v387
    %v436 = vpack.c.b16 %v404, %v388
    %v437 = vpack.c.b16 %v405, %v389
    %v438 = vpack.c.b16 %v406, %v390
    %v439 = vpack.c.b16 %v407, %v391
    %v440 = vpack.c.b16 %v408, %v392
    %v441 = vpack.c.b16 %v409, %v393
    %v442 = vpack.c.b16 %v410, %v394
    %v443 = vpack.c.b16 %v411, %v395
    %v444 = vpack.c.b16 %v412, %v396
    %v445 = vpack.c.b16 %v413, %v397
    %v446 = vpack.c.b16 %v414, %v398
    %v447 = vpack.c.b16 %v415, %v399
    %v448 = vpack.c.b16 %v416, %v400
    %v449 = vpack.c.b16 %v417, %v401
    %v738 = vunpack.c.l.b16 %v62
    %v739 = vunpack.c.l.b16 %v63
    %v740 = vunpack.c.l.b16 %v64
    %v741 = vunpack.c.l.b16 %v65
    %v742 = vunpack.c.l.b16 %v66
    %v743 = vunpack.c.l.b16 %v67
    %v744 = vunpack.c.l.b16 %v68
    %v745 = vunpack.c.l.b16 %v69
    %v746 = vunpack.c.l.b16 %v70
    %v747 = vunpack.c.l.b16 %v71
    %v748 = vunpack.c.l.b16 %v72
    %v749 = vunpack.c.l.b16 %v73
    %v750 = vunpack.c.l.b16 %v74
    %v751 = vunpack.c.l.b16 %v75
    %v752 = vunpack.c.l.b16 %v76
    %v753 = vunpack.c.l.b16 %v77
    %v754 = vunpack.c.l.b16 %v78
    %v755 = vunpack.c.l.b16 %v79
    %v756 = vunpack.c.l.b16 %v80
    %v757 = vunpack.c.l.b16 %v81
    %v758 = vunpack.c.l.b16 %v82
    %v759 = vunpack.c.l.b16 %v83
    %v760 = vunpack.c.l.b16 %v84
    %v761 = vunpack.c.l.b16 %v85
    %v762 = vunpack.c.l.b16 %v86
    %v763 = vunpack.c.l.b16 %v87
    %v764 = vunpack.c.l.b16 %v88
    %v765 = vunpack.c.l.b16 %v89
    %v766 = vunpack.c.l.b16 %v90
    %v767 = vunpack.c.l.b16 %v91
    %v768 = vunpack.c.l.b16 %v92
    %v769 = vunpack.c.l.b16 %v93
    %v770 = vunpack.c.l.b16 %v94
    %v771 = vunpack.c.l.b16 %v95
    %v772 = vunpack.c.l.b16 %v96
    %v773 = vunpack.c.l.b16 %v97
    %v774 = vunpack.c.l.b16 %v98
    %v775 = vunpack.c.l.b16 %v99
    %v776 = vunpack.c.l.b16 %v100
    %v777 = vunpack.c.l.b16 %v101
    %v778 = vunpack.c.l.b16 %v102
    %v779 = vunpack.c.l.b16 %v103
    %v780 = vunpack.c.l.b16 %v104
    %v781 = vunpack.c.l.b16 %v105
    %v782 = vunpack.c.l.b16 %v106
    %v783 = vunpack.c.l.b16 %v107
    %v784 = vunpack.c.l.b16 %v108
    %v785 = vunpack.c.l.b16 %v109
    %v786 = vunpack.c.l.b16 %v110
    %v787 = vunpack.c.l.b16 %v111
    %v788 = vunpack.c.l.b16 %v112
    %v789 = vunpack.c.l.b16 %v113
    %v790 = vunpack.c.l.b16 %v114
    %v791 = vunpack.c.l.b16 %v115
    %v792 = vunpack.c.l.b16 %v116
    %v793 = vunpack.c.l.b16 %v117
    %v794 = vunpack.c.l.b16 %v118
    %v795 = vunpack.c.l.b16 %v119
    %v796 = vunpack.c.l.b16 %v120
    %v797 = vunpack.c.l.b16 %v121
    %v798 = vunpack.c.l.b16 %v122
    %v799 = vunpack.c.l.b16 %v123
    %v800 = vunpack.c.l.b16 %v124
    %v801 = vunpack.c.l.b16 %v125
    %v802 = vunpack.c.l.b16 %v126
    %v803 = vunpack.c.l.b16 %v127
    %v804 = vunpack.c.l.b16 %v128
    %v805 = vunpack.c.l.b16 %v129
    %v806 = vunpack.c.l.b16 %v130
    %v807 = vunpack.c.l.b16 %v131
    %v808 = vunpack.c.l.b16 %v132
    %v809 = vunpack.c.l.b16 %v133
    %v810 = vunpack.c.l.b16 %v134
    %v811 = vunpack.c.l.b16 %v135
    %v812 = vunpack.c.l.b16 %v136
    %v813 = vunpack.c.l.b16 %v137
    %v814 = vunpack.c.l.b16 %v138
    %v815 = vunpack.c.l.b16 %v139
    %v816 = vunpack.c.l.b16 %v140
    %v817 = vunpack.c.l.b16 %v141
    %v818 = vunpack.c.l.b16 %v142
    %v819 = vunpack.c.l.b16 %v143
    %v820 = vunpack.c.l.b16 %v144
    %v821 = vunpack.c.l.b16 %v145
    %v822 = vunpack.c.l.b16 %v146
    %v823 = vunpack.c.l.b16 %v147
    %v824 = vunpack.c.l.b16 %v148
    %v825 = vunpack.c.l.b16 %v149
    %v826 = vunpack.c.l.b16 %v150
    %v827 = vunpack.c.l.b16 %v151
    %v828 = vunpack.c.l.b16 %v152
    %v829 = vunpack.c.l.b16 %v153
    %v830 = vunpack.c.l.b16 %v154
    %v831 = vunpack.c.l.b16 %v155
    %v832 = vunpack.c.l.b16 %v156
    %v833 = vunpack.c.l.b16 %v157
    %v834 = vunpack.c.l.b16 %v158
    %v835 = vunpack.c.l.b16 %v159
    %v836 = vunpack.c.l.b16 %v160
    %v837 = vunpack.c.l.b16 %v161
    %v838 = vunpack.c.l.b16 %v162
    %v839 = vunpack.c.l.b16 %v163
    %v840 = vunpack.c.l.b16 %v164
    %v841 = vunpack.c.l.b16 %v165
    %v842 = vunpack.c.l.b16 %v166
    %v843 = vunpack.c.l.b16 %v167
    %v844 = vunpack.c.l.b16 %v168
    %v845 = vunpack.c.l.b16 %v169
    %v846 = vunpack.c.l.b16 %v170
    %v847 = vunpack.c.l.b16 %v171
    %v848 = vunpack.c.l.b16 %v172
    %v849 = vunpack.c.l.b16 %v173
    %v850 = vunpack.c.l.b16 %v174
    %v851 = vunpack.c.l.b16 %v175
    %v852 = vunpack.c.l.b16 %v176
    %v853 = vunpack.c.l.b16 %v177
    %v854 = vunpack.c.l.b16 %v178
    %v855 = vunpack.c.l.b16 %v179
    %v856 = vunpack.c.l.b16 %v180
    %v857 = vunpack.c.l.b16 %v181
    %v858 = vunpack.c.l.b16 %v182
    %v859 = vunpack.c.l.b16 %v183
    %v860 = vunpack.c.l.b16 %v184
    %v861 = vunpack.c.l.b16 %v185
    %v862 = vunpack.c.l.b16 %v186
    %v863 = vunpack.c.l.b16 %v187
    %v864 = vunpack.c.l.b16 %v188
    %v865 = vunpack.c.l.b16 %v189
    %v866 = vunpack.c.l.b16 %v190
    %v867 = vunpack.c.l.b16 %v191
    %v868 = vunpack.c.l.b16 %v192
    %v869 = vunpack.c.l.b16 %v193
    %v870 = vunpack.c.l.b16 %v194
    %v871 = vunpack.c.l.b16 %v195
    %v872 = vunpack.c.l.b16 %v196
    %v873 = vunpack.c.l.b16 %v197
    %v874 = vunpack.c.l.b16 %v198
    %v875 = vunpack.c.l.b16 %v199
    %v876 = vunpack.c.l.b16 %v200
    %v877 = vunpack.c.l.b16 %v201
    %v878 = vunpack.c.l.b16 %v202
    %v879 = vunpack.c.l.b16 %v203
    %v880 = vunpack.c.l.b16 %v204
    %v881 = vunpack.c.l.b16 %v205
    %v882 = vunpack.c.l.b16 %v206
    %v883 = vunpack.c.l.b16 %v207
    %v884 = vunpack.c.l.b16 %v208
    %v885 = vunpack.c.l.b16 %v209
    %v886 = vunpack.c.l.b16 %v210
    %v887 = vunpack.c.l.b16 %v211
    %v888 = vunpack.c.l.b16 %v212
    %v889 = vunpack.c.l.b16 %v213
    %v890 = vunpack.c.l.b16 %v214
    %v891 = vunpack.c.l.b16 %v215
    %v892 = vunpack.c.l.b16 %v216
    %v893 = vunpack.c.l.b16 %v217
    %v894 = vunpack.c.l.b16 %v218
    %v895 = vunpack.c.l.b16 %v219
    %v896 = vunpack.c.l.b16 %v220
    %v897 = vunpack.c.l.b16 %v221
    %v898 = vunpack.c.l.b16 %v222
    %v899 = vunpack.c.l.b16 %v223
    %v900 = vunpack.c.l.b16 %v224
    %v901 = vunpack.c.l.b16 %v225
    %v902 = vunpack.c.l.b16 %v226
    %v903 = vunpack.c.l.b16 %v227
    %v904 = vunpack.c.l.b16 %v228
    %v905 = vunpack.c.l.b16 %v229
    %v906 = vunpack.c.l.b16 %v230
    %v907 = vunpack.c.l.b16 %v231
    %v908 = vunpack.c.l.b16 %v232
    %v909 = vunpack.c.l.b16 %v233
    %v910 = vunpack.c.l.b16 %v234
    %v911 = vunpack.c.l.b16 %v235
    %v912 = vunpack.c.l.b16 %v236
    %v913 = vunpack.c.l.b16 %v237
    %v914 = vunpack.c.l.b16 %v238
    %v915 = vunpack.c.l.b16 %v239
    %v916 = vunpack.c.l.b16 %v240
    %v917 = vunpack.c.l.b16 %v241
    %v918 = vunpack.c.l.b16 %v242
    %v919 = vunpack.c.l.b16 %v243
    %v920 = vunpack.c.l.b16 %v244
    %v921 = vunpack.c.l.b16 %v245
    %v922 = vunpack.c.l.b16 %v246
    %v923 = vunpack.c.l.b16 %v247
    %v924 = vunpack.c.l.b16 %v248
    %v925 = vunpack.c.l.b16 %v249
    %v926 = vunpack.c.l.b16 %v250
    %v927 = vunpack.c.l.b16 %v251
    %v928 = vunpack.c.l.b16 %v252
    %v929 = vunpack.c.l.b16 %v253
    %v930 = vunpack.c.l.b16 %v254
    %v931 = vunpack.c.l.b16 %v255
    %v932 = vunpack.c.l.b16 %v256
    %v933 = vunpack.c.l.b16 %v257
    %v934 = vunpack.c.l.b16 %v258
    %v935 = vunpack.c.l.b16 %v259
    %v936 = vunpack.c.l.b16 %v260
    %v937 = vunpack.c.l.b16 %v261
    %v938 = vunpack.c.l.b16 %v262
    %v939 = vunpack.c.l.b16 %v263
    %v940 = vunpack.c.l.b16 %v264
    %v941 = vunpack.c.l.b16 %v265
    %v942 = vunpack.c.l.b16 %v266
    %v943 = vunpack.c.l.b16 %v267
    %v944 = vunpack.c.l.b16 %v268
    %v945 = vunpack.c.l.b16 %v269
    %v946 = vunpack.c.l.b16 %v270
    %v947 = vunpack.c.l.b16 %v271
    %v948 = vunpack.c.l.b16 %v272
    %v949 = vunpack.c.l.b16 %v273
    %v950 = vunpack.c.l.b16 %v274
    %v951 = vunpack.c.l.b16 %v275
    %v952 = vunpack.c.l.b16 %v276
    %v953 = vunpack.c.l.b16 %v277
    %v954 = vunpack.c.l.b16 %v278
    %v955 = vunpack.c.l.b16 %v279
    %v956 = vunpack.c.l.b16 %v280
    %v957 = vunpack.c.l.b16 %v281
    %v958 = vunpack.c.l.b16 %v282
    %v959 = vunpack.c.l.b16 %v283
    %v960 = vunpack.c.l.b16 %v284
    %v961 = vunpack.c.l.b16 %v285
    %v962 = vunpack.c.l.b16 %v286
    %v963 = vunpack.c.l.b16 %v287
    %v964 = vunpack.c.l.b16 %v288
    %v965 = vunpack.c.l.b16 %v289
    %v966 = vunpack.c.l.b16 %v290
    %v967 = vunpack.c.l.b16 %v291
    %v968 = vunpack.c.l.b16 %v292
    %v969 = vunpack.c.l.b16 %v293
    %v970 = vunpack.c.l.b16 %v294
    %v971 = vunpack.c.l.b16 %v295
    %v972 = vunpack.c.l.b16 %v296
    %v973 = vunpack.c.l.b16 %v297
    %v974 = vunpack.c.l.b16 %v298
    %v975 = vunpack.c.l.b16 %v299
    %v976 = vunpack.c.l.b16 %v300
    %v977 = vunpack.c.l.b16 %v301
    %v978 = vunpack.c.l.b16 %v302
    %v979 = vunpack.c.l.b16 %v303
    %v980 = vunpack.c.l.b16 %v304
    %v981 = vunpack.c.l.b16 %v305
    %v982 = vunpack.c.l.b16 %v306
    %v983 = vunpack.c.l.b16 %v307
    %v984 = vunpack.c.l.b16 %v308
    %v985 = vunpack.c.l.b16 %v309
    %v986 = vunpack.c.l.b16 %v310
    %v987 = vunpack.c.l.b16 %v311
    %v988 = vunpack.c.l.b16 %v312
    %v989 = vunpack.c.l.b16 %v313
    %v990 = vunpack.c.l.b16 %v314
    %v991 = vunpack.c.l.b16 %v315
    %v992 = vunpack.c.l.b16 %v316
    %v993 = vunpack.c.l.b16 %v317
    %v994 = vpack.c.b16 %v739, %v738
    %v995 = vpack.c.b16 %v741, %v740
    %v996 = vpack.c.b16 %v743, %v742
    %v997 = vpack.c.b16 %v745, %v744
    %v998 = vpack.c.b16 %v747, %v746
    %v999 = vpack.c.b16 %v749, %v748
    %v1000 = vpack.c.b16 %v751, %v750
    %v1001 = vpack.c.b16 %v753, %v752
    %v1002 = vpack.c.b16 %v755, %v754
    %v1003 = vpack.c.b16 %v757, %v756
    %v1004 = vpack.c.b16 %v759, %v758
    %v1005 = vpack.c.b16 %v761, %v760
    %v1006 = vpack.c.b16 %v763, %v762
    %v1007 = vpack.c.b16 %v765, %v764
    %v1008 = vpack.c.b16 %v767, %v766
    %v1009 = vpack.c.b16 %v769, %v768
    %v1010 = vpack.c.b16 %v771, %v770
    %v1011 = vpack.c.b16 %v773, %v772
    %v1012 = vpack.c.b16 %v775, %v774
    %v1013 = vpack.c.b16 %v777, %v776
    %v1014 = vpack.c.b16 %v779, %v778
    %v1015 = vpack.c.b16 %v781, %v780
    %v1016 = vpack.c.b16 %v783, %v782
    %v1017 = vpack.c.b16 %v785, %v784
    %v1018 = vpack.c.b16 %v787, %v786
    %v1019 = vpack.c.b16 %v789, %v788
    %v1020 = vpack.c.b16 %v791, %v790
    %v1021 = vpack.c.b16 %v793, %v792
    %v1022 = vpack.c.b16 %v795, %v794
    %v1023 = vpack.c.b16 %v797, %v796
    %v1024 = vpack.c.b16 %v799, %v798
    %v1025 = vpack.c.b16 %v801, %v800
    %v1026 = vpack.c.b16 %v803, %v802
    %v1027 = vpack.c.b16 %v805, %v804
    %v1028 = vpack.c.b16 %v807, %v806
    %v1029 = vpack.c.b16 %v809, %v808
    %v1030 = vpack.c.b16 %v811, %v810
    %v1031 = vpack.c.b16 %v813, %v812
    %v1032 = vpack.c.b16 %v815, %v814
    %v1033 = vpack.c.b16 %v817, %v816
    %v1034 = vpack.c.b16 %v819, %v818
    %v1035 = vpack.c.b16 %v821, %v820
    %v1036 = vpack.c.b16 %v823, %v822
    %v1037 = vpack.c.b16 %v825, %v824
    %v1038 = vpack.c.b16 %v827, %v826
    %v1039 = vpack.c.b16 %v829, %v828
    %v1040 = vpack.c.b16 %v831, %v830
    %v1041 = vpack.c.b16 %v833, %v832
    %v1042 = vpack.c.b16 %v835, %v834
    %v1043 = vpack.c.b16 %v837, %v836
    %v1044 = vpack.c.b16 %v839, %v838
    %v1045 = vpack.c.b16 %v841, %v840
    %v1046 = vpack.c.b16 %v843, %v842
    %v1047 = vpack.c.b16 %v845, %v844
    %v1048 = vpack.c.b16 %v847, %v846
    %v1049 = vpack.c.b16 %v849, %v848
    %v1050 = vpack.c.b16 %v851, %v850
    %v1051 = vpack.c.b16 %v853, %v852
    %v1052 = vpack.c.b16 %v855, %v854
    %v1053 = vpack.c.b16 %v857, %v856
    %v1054 = vpack.c.b16 %v859, %v858
    %v1055 = vpack.c.b16 %v861, %v860
    %v1056 = vpack.c.b16 %v863, %v862
    %v1057 = vpack.c.b16 %v865, %v864
    %v1058 = vpack.c.b16 %v867, %v866
    %v1059 = vpack.c.b16 %v869, %v868
    %v1060 = vpack.c.b16 %v871, %v870
    %v1061 = vpack.c.b16 %v873, %v872
    %v1062 = vpack.c.b16 %v875, %v874
    %v1063 = vpack.c.b16 %v877, %v876
    %v1064 = vpack.c.b16 %v879, %v878
    %v1065 = vpack.c.b16 %v881, %v880
    %v1066 = vpack.c.b16 %v883, %v882
    %v1067 = vpack.c.b16 %v885, %v884
    %v1068 = vpack.c.b16 %v887, %v886
    %v1069 = vpack.c.b16 %v889, %v888
    %v1070 = vpack.c.b16 %v891, %v890
    %v1071 = vpack.c.b16 %v893, %v892
    %v1072 = vpack.c.b16 %v895, %v894
    %v1073 = vpack.c.b16 %v897, %v896
    %v1074 = vpack.c.b16 %v899, %v898
    %v1075 = vpack.c.b16 %v901, %v900
    %v1076 = vpack.c.b16 %v903, %v902
    %v1077 = vpack.c.b16 %v905, %v904
    %v1078 = vpack.c.b16 %v907, %v906
    %v1079 = vpack.c.b16 %v909, %v908
    %v1080 = vpack.c.b16 %v911, %v910
    %v1081 = vpack.c.b16 %v913, %v912
    %v1082 = vpack.c.b16 %v915, %v914
    %v1083 = vpack.c.b16 %v917, %v916
    %v1084 = vpack.c.b16 %v919, %v918
    %v1085 = vpack.c.b16 %v921, %v920
    %v1086 = vpack.c.b16 %v923, %v922
    %v1087 = vpack.c.b16 %v925, %v924
    %v1088 = vpack.c.b16 %v927, %v926
    %v1089 = vpack.c.b16 %v929, %v928
    %v1090 = vpack.c.b16 %v931, %v930
    %v1091 = vpack.c.b16 %v933, %v932
    %v1092 = vpack.c.b16 %v935, %v934
    %v1093 = vpack.c.b16 %v937, %v936
    %v1094 = vpack.c.b16 %v939, %v938
    %v1095 = vpack.c.b16 %v941, %v940
    %v1096 = vpack.c.b16 %v943, %v942
    %v1097 = vpack.c.b16 %v945, %v944
    %v1098 = vpack.c.b16 %v947, %v946
    %v1099 = vpack.c.b16 %v949, %v948
    %v1100 = vpack.c.b16 %v951, %v950
    %v1101 = vpack.c.b16 %v953, %v952
    %v1102 = vpack.c.b16 %v955, %v954
    %v1103 = vpack.c.b16 %v957, %v956
    %v1104 = vpack.c.b16 %v959, %v958
    %v1105 = vpack.c.b16 %v961, %v960
    %v1106 = vpack.c.b16 %v963, %v962
    %v1107 = vpack.c.b16 %v965, %v964
    %v1108 = vpack.c.b16 %v967, %v966
    %v1109 = vpack.c.b16 %v969, %v968
    %v1110 = vpack.c.b16 %v971, %v970
    %v1111 = vpack.c.b16 %v973, %v972
    %v1112 = vpack.c.b16 %v975, %v974
    %v1113 = vpack.c.b16 %v977, %v976
    %v1114 = vpack.c.b16 %v979, %v978
    %v1115 = vpack.c.b16 %v981, %v980
    %v1116 = vpack.c.b16 %v983, %v982
    %v1117 = vpack.c.b16 %v985, %v984
    %v1118 = vpack.c.b16 %v987, %v986
    %v1119 = vpack.c.b16 %v989, %v988
    %v1120 = vpack.c.b16 %v991, %v990
    %v1121 = vpack.c.b16 %v993, %v992
    %1250 = vmatpush.bf16.msra.mxu0 %v1001
    %1251 = vmatpush.bf16.msra.mxu0 %v1000
    %1252 = vmatpush.bf16.msra.mxu0 %v999
    %1253 = vmatpush.bf16.msra.mxu0 %v998
    %1254 = vmatpush.bf16.msra.mxu0 %v997
    %1255 = vmatpush.bf16.msra.mxu0 %v996
    %1256 = vmatpush.bf16.msra.mxu0 %v995
    %1257 = vmatpush.bf16.msra.mxu0 %v994
    %1258 = vmatmul.bf16.gmra.mxu0 %v418
    %v1259 = vpop.f32.mrf.mxu0
    %v1260 = vadd.f32 %v320, %v1259
    %v1261 = vpop.f32.mrf.mxu0
    %v1262 = vadd.f32 %v320, %v1261
    %1263 = vmatmul.bf16.gmra.mxu0 %v434
    %v1264 = vpop.f32.mrf.mxu0
    %v1265 = vadd.f32 %v320, %v1264
    %v1266 = vpop.f32.mrf.mxu0
    %v1267 = vadd.f32 %v320, %v1266
    %1268 = vdwg.mxu0
    %1269 = vmatpush.bf16.msra.mxu0 %v1009
    %1270 = vmatpush.bf16.msra.mxu0 %v1008
    %1271 = vmatpush.bf16.msra.mxu0 %v1007
    %1272 = vmatpush.bf16.msra.mxu0 %v1006
    %1273 = vmatpush.bf16.msra.mxu0 %v1005
    %1274 = vmatpush.bf16.msra.mxu0 %v1004
    %1275 = vmatpush.bf16.msra.mxu0 %v1003
    %1276 = vmatpush.bf16.msra.mxu0 %v1002
    %1277 = vmatmul.bf16.gmra.mxu0 %v419
    %v1278 = vpop.f32.mrf.mxu0
    %v1279 = vadd.f32 %v1260, %v1278
    %v1280 = vpop.f32.mrf.mxu0
    %v1281 = vadd.f32 %v1262, %v1280
    %1282 = vmatmul.bf16.gmra.mxu0 %v435
    %v1283 = vpop.f32.mrf.mxu0
    %v1284 = vadd.f32 %v1265, %v1283
    %v1285 = vpop.f32.mrf.mxu0
    %v1286 = vadd.f32 %v1267, %v1285
    %1287 = vdwg.mxu0
    %1288 = vmatpush.bf16.msra.mxu0 %v1017
    %1289 = vmatpush.bf16.msra.mxu0 %v1016
    %1290 = vmatpush.bf16.msra.mxu0 %v1015
    %1291 = vmatpush.bf16.msra.mxu0 %v1014
    %1292 = vmatpush.bf16.msra.mxu0 %v1013
    %1293 = vmatpush.bf16.msra.mxu0 %v1012
    %1294 = vmatpush.bf16.msra.mxu0 %v1011
    %1295 = vmatpush.bf16.msra.mxu0 %v1010
    %1296 = vmatmul.bf16.gmra.mxu0 %v420
    %v1297 = vpop.f32.mrf.mxu0
    %v1298 = vadd.f32 %v1279, %v1297
    %v1299 = vpop.f32.mrf.mxu0
    %v1300 = vadd.f32 %v1281, %v1299
    %1301 = vmatmul.bf16.gmra.mxu0 %v436
    %v1302 = vpop.f32.mrf.mxu0
    %v1303 = vadd.f32 %v1284, %v1302
    %v1304 = vpop.f32.mrf.mxu0
    %v1305 = vadd.f32 %v1286, %v1304
    %1306 = vdwg.mxu0
    %1307 = vmatpush.bf16.msra.mxu0 %v1025
    %1308 = vmatpush.bf16.msra.mxu0 %v1024
    %1309 = vmatpush.bf16.msra.mxu0 %v1023
    %1310 = vmatpush.bf16.msra.mxu0 %v1022
    %1311 = vmatpush.bf16.msra.mxu0 %v1021
    %1312 = vmatpush.bf16.msra.mxu0 %v1020
    %1313 = vmatpush.bf16.msra.mxu0 %v1019
    %1314 = vmatpush.bf16.msra.mxu0 %v1018
    %1315 = vmatmul.bf16.gmra.mxu0 %v421
    %v1316 = vpop.f32.mrf.mxu0
    %v1317 = vadd.f32 %v1298, %v1316
    %v1318 = vpop.f32.mrf.mxu0
    %v1319 = vadd.f32 %v1300, %v1318
    %1320 = vmatmul.bf16.gmra.mxu0 %v437
    %v1321 = vpop.f32.mrf.mxu0
    %v1322 = vadd.f32 %v1303, %v1321
    %v1323 = vpop.f32.mrf.mxu0
    %v1324 = vadd.f32 %v1305, %v1323
    %1325 = vdwg.mxu0
    %1326 = vmatpush.bf16.msra.mxu0 %v1033
    %1327 = vmatpush.bf16.msra.mxu0 %v1032
    %1328 = vmatpush.bf16.msra.mxu0 %v1031
    %1329 = vmatpush.bf16.msra.mxu0 %v1030
    %1330 = vmatpush.bf16.msra.mxu0 %v1029
    %1331 = vmatpush.bf16.msra.mxu0 %v1028
    %1332 = vmatpush.bf16.msra.mxu0 %v1027
    %1333 = vmatpush.bf16.msra.mxu0 %v1026
    %1334 = vmatmul.bf16.gmra.mxu0 %v422
    %v1335 = vpop.f32.mrf.mxu0
    %v1336 = vadd.f32 %v1317, %v1335
    %v1337 = vpop.f32.mrf.mxu0
    %v1338 = vadd.f32 %v1319, %v1337
    %1339 = vmatmul.bf16.gmra.mxu0 %v438
    %v1340 = vpop.f32.mrf.mxu0
    %v1341 = vadd.f32 %v1322, %v1340
    %v1342 = vpop.f32.mrf.mxu0
    %v1343 = vadd.f32 %v1324, %v1342
    %1344 = vdwg.mxu0
    %1345 = vmatpush.bf16.msra.mxu0 %v1041
    %1346 = vmatpush.bf16.msra.mxu0 %v1040
    %1347 = vmatpush.bf16.msra.mxu0 %v1039
    %1348 = vmatpush.bf16.msra.mxu0 %v1038
    %1349 = vmatpush.bf16.msra.mxu0 %v1037
    %1350 = vmatpush.bf16.msra.mxu0 %v1036
    %1351 = vmatpush.bf16.msra.mxu0 %v1035
    %1352 = vmatpush.bf16.msra.mxu0 %v1034
    %1353 = vmatmul.bf16.gmra.mxu0 %v423
    %v1354 = vpop.f32.mrf.mxu0
    %v1355 = vadd.f32 %v1336, %v1354
    %v1356 = vpop.f32.mrf.mxu0
    %v1357 = vadd.f32 %v1338, %v1356
    %1358 = vmatmul.bf16.gmra.mxu0 %v439
    %v1359 = vpop.f32.mrf.mxu0
    %v1360 = vadd.f32 %v1341, %v1359
    %v1361 = vpop.f32.mrf.mxu0
    %v1362 = vadd.f32 %v1343, %v1361
    %1363 = vdwg.mxu0
    %1364 = vmatpush.bf16.msra.mxu0 %v1049
    %1365 = vmatpush.bf16.msra.mxu0 %v1048
    %1366 = vmatpush.bf16.msra.mxu0 %v1047
    %1367 = vmatpush.bf16.msra.mxu0 %v1046
    %1368 = vmatpush.bf16.msra.mxu0 %v1045
    %1369 = vmatpush.bf16.msra.mxu0 %v1044
    %1370 = vmatpush.bf16.msra.mxu0 %v1043
    %1371 = vmatpush.bf16.msra.mxu0 %v1042
    %1372 = vmatmul.bf16.gmra.mxu0 %v424
    %v1373 = vpop.f32.mrf.mxu0
    %v1374 = vadd.f32 %v1355, %v1373
    %v1375 = vpop.f32.mrf.mxu0
    %v1376 = vadd.f32 %v1357, %v1375
    %1377 = vmatmul.bf16.gmra.mxu0 %v440
    %v1378 = vpop.f32.mrf.mxu0
    %v1379 = vadd.f32 %v1360, %v1378
    %v1380 = vpop.f32.mrf.mxu0
    %v1381 = vadd.f32 %v1362, %v1380
    %1382 = vdwg.mxu0
    %1383 = vmatpush.bf16.msra.mxu0 %v1057
    %1384 = vmatpush.bf16.msra.mxu0 %v1056
    %1385 = vmatpush.bf16.msra.mxu0 %v1055
    %1386 = vmatpush.bf16.msra.mxu0 %v1054
    %1387 = vmatpush.bf16.msra.mxu0 %v1053
    %1388 = vmatpush.bf16.msra.mxu0 %v1052
    %1389 = vmatpush.bf16.msra.mxu0 %v1051
    %1390 = vmatpush.bf16.msra.mxu0 %v1050
    %1391 = vmatmul.bf16.gmra.mxu0 %v425
    %v1392 = vpop.f32.mrf.mxu0
    %v1393 = vadd.f32 %v1374, %v1392
    %v1394 = vpop.f32.mrf.mxu0
    %v1395 = vadd.f32 %v1376, %v1394
    %1396 = vmatmul.bf16.gmra.mxu0 %v441
    %v1397 = vpop.f32.mrf.mxu0
    %v1398 = vadd.f32 %v1379, %v1397
    %v1399 = vpop.f32.mrf.mxu0
    %v1400 = vadd.f32 %v1381, %v1399
    %1401 = vdwg.mxu0
    %1402 = vmatpush.bf16.msra.mxu0 %v1065
    %1403 = vmatpush.bf16.msra.mxu0 %v1064
    %1404 = vmatpush.bf16.msra.mxu0 %v1063
    %1405 = vmatpush.bf16.msra.mxu0 %v1062
    %1406 = vmatpush.bf16.msra.mxu0 %v1061
    %1407 = vmatpush.bf16.msra.mxu0 %v1060
    %1408 = vmatpush.bf16.msra.mxu0 %v1059
    %1409 = vmatpush.bf16.msra.mxu0 %v1058
    %1410 = vmatmul.bf16.gmra.mxu0 %v426
    %v1411 = vpop.f32.mrf.mxu0
    %v1412 = vadd.f32 %v1393, %v1411
    %v1413 = vpop.f32.mrf.mxu0
    %v1414 = vadd.f32 %v1395, %v1413
    %1415 = vmatmul.bf16.gmra.mxu0 %v442
    %v1416 = vpop.f32.mrf.mxu0
    %v1417 = vadd.f32 %v1398, %v1416
    %v1418 = vpop.f32.mrf.mxu0
    %v1419 = vadd.f32 %v1400, %v1418
    %1420 = vdwg.mxu0
    %1421 = vmatpush.bf16.msra.mxu0 %v1073
    %1422 = vmatpush.bf16.msra.mxu0 %v1072
    %1423 = vmatpush.bf16.msra.mxu0 %v1071
    %1424 = vmatpush.bf16.msra.mxu0 %v1070
    %1425 = vmatpush.bf16.msra.mxu0 %v1069
    %1426 = vmatpush.bf16.msra.mxu0 %v1068
    %1427 = vmatpush.bf16.msra.mxu0 %v1067
    %1428 = vmatpush.bf16.msra.mxu0 %v1066
    %1429 = vmatmul.bf16.gmra.mxu0 %v427
    %v1430 = vpop.f32.mrf.mxu0
    %v1431 = vadd.f32 %v1412, %v1430
    %v1432 = vpop.f32.mrf.mxu0
    %v1433 = vadd.f32 %v1414, %v1432
    %1434 = vmatmul.bf16.gmra.mxu0 %v443
    %v1435 = vpop.f32.mrf.mxu0
    %v1436 = vadd.f32 %v1417, %v1435
    %v1437 = vpop.f32.mrf.mxu0
    %v1438 = vadd.f32 %v1419, %v1437
    %1439 = vdwg.mxu0
    %1440 = vmatpush.bf16.msra.mxu0 %v1081
    %1441 = vmatpush.bf16.msra.mxu0 %v1080
    %1442 = vmatpush.bf16.msra.mxu0 %v1079
    %1443 = vmatpush.bf16.msra.mxu0 %v1078
    %1444 = vmatpush.bf16.msra.mxu0 %v1077
    %1445 = vmatpush.bf16.msra.mxu0 %v1076
    %1446 = vmatpush.bf16.msra.mxu0 %v1075
    %1447 = vmatpush.bf16.msra.mxu0 %v1074
    %1448 = vmatmul.bf16.gmra.mxu0 %v428
    %v1449 = vpop.f32.mrf.mxu0
    %v1450 = vadd.f32 %v1431, %v1449
    %v1451 = vpop.f32.mrf.mxu0
    %v1452 = vadd.f32 %v1433, %v1451
    %1453 = vmatmul.bf16.gmra.mxu0 %v444
    %v1454 = vpop.f32.mrf.mxu0
    %v1455 = vadd.f32 %v1436, %v1454
    %v1456 = vpop.f32.mrf.mxu0
    %v1457 = vadd.f32 %v1438, %v1456
    %1458 = vdwg.mxu0
    %1459 = vmatpush.bf16.msra.mxu0 %v1089
    %1460 = vmatpush.bf16.msra.mxu0 %v1088
    %1461 = vmatpush.bf16.msra.mxu0 %v1087
    %1462 = vmatpush.bf16.msra.mxu0 %v1086
    %1463 = vmatpush.bf16.msra.mxu0 %v1085
    %1464 = vmatpush.bf16.msra.mxu0 %v1084
    %1465 = vmatpush.bf16.msra.mxu0 %v1083
    %1466 = vmatpush.bf16.msra.mxu0 %v1082
    %1467 = vmatmul.bf16.gmra.mxu0 %v429
    %v1468 = vpop.f32.mrf.mxu0
    %v1469 = vadd.f32 %v1450, %v1468
    %v1470 = vpop.f32.mrf.mxu0
    %v1471 = vadd.f32 %v1452, %v1470
    %1472 = vmatmul.bf16.gmra.mxu0 %v445
    %v1473 = vpop.f32.mrf.mxu0
    %v1474 = vadd.f32 %v1455, %v1473
    %v1475 = vpop.f32.mrf.mxu0
    %v1476 = vadd.f32 %v1457, %v1475
    %1477 = vdwg.mxu0
    %1478 = vmatpush.bf16.msra.mxu0 %v1097
    %1479 = vmatpush.bf16.msra.mxu0 %v1096
    %1480 = vmatpush.bf16.msra.mxu0 %v1095
    %1481 = vmatpush.bf16.msra.mxu0 %v1094
    %1482 = vmatpush.bf16.msra.mxu0 %v1093
    %1483 = vmatpush.bf16.msra.mxu0 %v1092
    %1484 = vmatpush.bf16.msra.mxu0 %v1091
    %1485 = vmatpush.bf16.msra.mxu0 %v1090
    %1486 = vmatmul.bf16.gmra.mxu0 %v430
    %v1487 = vpop.f32.mrf.mxu0
    %v1488 = vadd.f32 %v1469, %v1487
    %v1489 = vpop.f32.mrf.mxu0
    %v1490 = vadd.f32 %v1471, %v1489
    %1491 = vmatmul.bf16.gmra.mxu0 %v446
    %v1492 = vpop.f32.mrf.mxu0
    %v1493 = vadd.f32 %v1474, %v1492
    %v1494 = vpop.f32.mrf.mxu0
    %v1495 = vadd.f32 %v1476, %v1494
    %1496 = vdwg.mxu0
    %1497 = vmatpush.bf16.msra.mxu0 %v1105
    %1498 = vmatpush.bf16.msra.mxu0 %v1104
    %1499 = vmatpush.bf16.msra.mxu0 %v1103
    %1500 = vmatpush.bf16.msra.mxu0 %v1102
    %1501 = vmatpush.bf16.msra.mxu0 %v1101
    %1502 = vmatpush.bf16.msra.mxu0 %v1100
    %1503 = vmatpush.bf16.msra.mxu0 %v1099
    %1504 = vmatpush.bf16.msra.mxu0 %v1098
    %1505 = vmatmul.bf16.gmra.mxu0 %v431
    %v1506 = vpop.f32.mrf.mxu0
    %v1507 = vadd.f32 %v1488, %v1506
    %v1508 = vpop.f32.mrf.mxu0
    %v1509 = vadd.f32 %v1490, %v1508
    %1510 = vmatmul.bf16.gmra.mxu0 %v447
    %v1511 = vpop.f32.mrf.mxu0
    %v1512 = vadd.f32 %v1493, %v1511
    %v1513 = vpop.f32.mrf.mxu0
    %v1514 = vadd.f32 %v1495, %v1513
    %1515 = vdwg.mxu0
    %1516 = vmatpush.bf16.msra.mxu0 %v1113
    %1517 = vmatpush.bf16.msra.mxu0 %v1112
    %1518 = vmatpush.bf16.msra.mxu0 %v1111
    %1519 = vmatpush.bf16.msra.mxu0 %v1110
    %1520 = vmatpush.bf16.msra.mxu0 %v1109
    %1521 = vmatpush.bf16.msra.mxu0 %v1108
    %1522 = vmatpush.bf16.msra.mxu0 %v1107
    %1523 = vmatpush.bf16.msra.mxu0 %v1106
    %1524 = vmatmul.bf16.gmra.mxu0 %v432
    %v1525 = vpop.f32.mrf.mxu0
    %v1526 = vadd.f32 %v1507, %v1525
    %v1527 = vpop.f32.mrf.mxu0
    %v1528 = vadd.f32 %v1509, %v1527
    %1529 = vmatmul.bf16.gmra.mxu0 %v448
    %v1530 = vpop.f32.mrf.mxu0
    %v1531 = vadd.f32 %v1512, %v1530
    %v1532 = vpop.f32.mrf.mxu0
    %v1533 = vadd.f32 %v1514, %v1532
    %1534 = vdwg.mxu0
    %1535 = vmatpush.bf16.msra.mxu0 %v1121
    %1536 = vmatpush.bf16.msra.mxu0 %v1120
    %1537 = vmatpush.bf16.msra.mxu0 %v1119
    %1538 = vmatpush.bf16.msra.mxu0 %v1118
    %1539 = vmatpush.bf16.msra.mxu0 %v1117
    %1540 = vmatpush.bf16.msra.mxu0 %v1116
    %1541 = vmatpush.bf16.msra.mxu0 %v1115
    %1542 = vmatpush.bf16.msra.mxu0 %v1114
    %1543 = vmatmul.bf16.gmra.mxu0 %v433
    %v1544 = vpop.f32.mrf.mxu0
    %v1545 = vadd.f32 %v1526, %v1544
    %v1546 = vpop.f32.mrf.mxu0
    %v1547 = vadd.f32 %v1528, %v1546
    %1548 = vmatmul.bf16.gmra.mxu0 %v449
    %v1549 = vpop.f32.mrf.mxu0
    %v1550 = vadd.f32 %v1531, %v1549
    %v1551 = vpop.f32.mrf.mxu0
    %v1552 = vadd.f32 %v1533, %v1551
    %1553 = vdwg.mxu0
    %vm1554 = vcmp.ge.f32.partialorder %v1545, 0.0
    %vm1555 = vcmp.ge.f32.partialorder %v1547, 0.0
    %vm1556 = vcmp.ge.f32.partialorder %v1550, 0.0
    %vm1557 = vcmp.ge.f32.partialorder %v1552, 0.0
    %v1558 = vmul.f32 %v1545, 0.2
    %v1559 = vmul.f32 %v1547, 0.2
    %v1560 = vmul.f32 %v1550, 0.2
    %v1561 = vmul.f32 %v1552, 0.2
    %v1562 = vsel %vm1554, %v1545, %v1558
    %v1563 = vsel %vm1555, %v1547, %v1559
    %v1564 = vsel %vm1556, %v1550, %v1560
    %v1565 = vsel %vm1557, %v1552, %v1561
    %v1566 = vmul.f32 %v1562, %v1562
    %v1567 = vmul.f32 %v1563, %v1563
    %v1568 = vmul.f32 %v1564, %v1564
    %v1569 = vmul.f32 %v1565, %v1565
    %1570 = vadd.xlane.f32.xlu0 %v1566
    %v1571 = vpop.xlane.xlu0 %1570
    %1572 = vadd.xlane.f32.xlu0 %v1567
    %v1573 = vpop.xlane.xlu0 %1572
    %1574 = vadd.xlane.f32.xlu0 %v1568
    %v1575 = vpop.xlane.xlu0 %1574
    %1576 = vadd.xlane.f32.xlu0 %v1569
    %v1577 = vpop.xlane.xlu0 %1576
    %v1578 = vrcp.pop 128.0
    %v1579 = vmul.f32 128.0, %v1578
    %v1580 = vsub.f32 1.0, %v1579
    %v1581 = vmul.f32 %v1578, %v1580
    %v1582 = vadd.f32 %v1578, %v1581
    %vm1583 = vweird.f32 %v1578
    %v1584 = vsel %vm1583, %v1578, %v1582
    %v1585 = vmul.f32 %v1571, %v1584
    %v1586 = vmul.f32 %v1573, %v1584
    %v1587 = vmul.f32 %v1575, %v1584
    %v1588 = vmul.f32 %v1577, %v1584
    %v1589 = vadd.f32 %v1585, 1e-08
    %v1590 = vadd.f32 %v1586, 1e-08
    %v1591 = vadd.f32 %v1587, 1e-08
    %v1592 = vadd.f32 %v1588, 1e-08
    %v1593 = vrsqrt.pop %v1589
    %v1594 = vmul.f32 %v1593, %v1589
    %v1595 = vmul.f32 %v1594, %v1593
    %v1596 = vmul.f32 0.5, %v1595
    %v1597 = vsub.f32 1.5, %v1596
    %v1598 = vmul.f32 %v1593, %v1597
    %vm1599 = vweird.f32 %v1589
    %vm1600 = vweird.f32 %v1593
    %vm1601 = vmor %vm1599, %vm1600
    %v1602 = vsel %vm1601, %v1593, %v1598
    %v1603 = vrsqrt.pop %v1590
    %v1604 = vmul.f32 %v1603, %v1590
    %v1605 = vmul.f32 %v1604, %v1603
    %v1606 = vmul.f32 0.5, %v1605
    %v1607 = vsub.f32 1.5, %v1606
    %v1608 = vmul.f32 %v1603, %v1607
    %vm1609 = vweird.f32 %v1590
    %vm1610 = vweird.f32 %v1603
    %vm1611 = vmor %vm1609, %vm1610
    %v1612 = vsel %vm1611, %v1603, %v1608
    %v1613 = vrsqrt.pop %v1591
    %v1614 = vmul.f32 %v1613, %v1591
    %v1615 = vmul.f32 %v1614, %v1613
    %v1616 = vmul.f32 0.5, %v1615
    %v1617 = vsub.f32 1.5, %v1616
    %v1618 = vmul.f32 %v1613, %v1617
    %vm1619 = vweird.f32 %v1591
    %vm1620 = vweird.f32 %v1613
    %vm1621 = vmor %vm1619, %vm1620
    %v1622 = vsel %vm1621, %v1613, %v1618
    %v1623 = vrsqrt.pop %v1592
    %v1624 = vmul.f32 %v1623, %v1592
    %v1625 = vmul.f32 %v1624, %v1623
    %v1626 = vmul.f32 0.5, %v1625
    %v1627 = vsub.f32 1.5, %v1626
    %v1628 = vmul.f32 %v1623, %v1627
    %vm1629 = vweird.f32 %v1592
    %vm1630 = vweird.f32 %v1623
    %vm1631 = vmor %vm1629, %vm1630
    %v1632 = vsel %vm1631, %v1623, %v1628
    %v1633 = vmul.f32 %v1562, %v1602
    %v1634 = vmul.f32 %v1563, %v1612
    %v1635 = vmul.f32 %v1564, %v1622
    %v1636 = vmul.f32 %v1565, %v1632
    %v1637 = vpack.c.bf16 %v1633, %v1633
    %v1638 = vpack.c.bf16 %v1634, %v1634
    %v1639 = vpack.c.bf16 %v1635, %v1635
    %v1640 = vpack.c.bf16 %v1636, %v1636
    %1641 = vst [vmem:[%s3] sm:$0xf] %v1637
    %1642 = vst [vmem:[%s3 + $0x4] sm:$0xf] %v1638
    %1643 = vst [vmem:[%s3 + $0x8] sm:$0xf] %v1639
    %1644 = vst [vmem:[%s3 + $0xc] sm:$0xf] %v1640
    // Predicated region
    $region18: #{generator_forward.2} parent=1 // pred_check
      _
    $region19: #{generator_forward.2} parent=1 // pred_check_branch
      %1646 = sbr.rel (0) target = $region21
    $region20: #{generator_forward.2} parent=1 // pred_region
      _
    $region21: #{generator_forward.2} parent=1 // pred_fallthru
      _
    // Predicated region
    $region22: #{generator_forward.2} parent=1 // pred_check
      _
    $region23: #{generator_forward.2} parent=1 // pred_check_branch
      %1648 = sbr.rel (0) target = $region25
    $region24: #{generator_forward.2} parent=1 // pred_region
      _
    $region25: #{generator_forward.2} parent=1 // pred_fallthru
      _
    %1649 = vsyncpa [#allocation3], 1

</llo_original>
